<compile_context>
chip_gen: v6e
topology: v6e:2x2x1
jax: 0.10.0
libtpu: 0.0.40
codegen_flags: <defaults>
</compile_context>

<pallas_src>
import jax
import jax.numpy as jnp
from jax.experimental import pallas as pl
from jax.experimental.pallas import tpu as pltpu


def _round_up(x, m):
    return ((x + m - 1) // m) * m


# ----------------------------------------------------------------------------
# Fused update kernel: one grid step processes TM atoms end-to-end.
#   ns_ref  : (TM, HP)      bf16   node_scalar tile
#   nv_ref  : (3, TM, HP)   bf16   node_vector tile (component-major)
#   wuv_ref : (HP, 2*HP)    bf16   [U_w | V_w]
#   w1_ref  : (2*HP, HP)    bf16   MLP layer 1 (rows: [Vv_norm half ; scalar half])
#   w2_ref  : (HP, 3*HP)    bf16   MLP layer 2 (cols: [a_vv | a_sv | a_ss])
#   cat_ref : (TM, 2*HP)    bf16   VMEM scratch for concat([Vv_norm, node_scalar])
# ----------------------------------------------------------------------------
def _painn_update_kernel(ns_ref, nv_ref, wuv_ref, buv_ref,
                         w1_ref, b1_ref, w2_ref, b2_ref,
                         ons_ref, onv_ref, cat_ref):
    tm, hp = ns_ref.shape
    f32 = jnp.float32
    bf16 = jnp.bfloat16

    ns = ns_ref[...]                                    # (TM, HP)    bf16
    nv = nv_ref[...]                                    # (3, TM, HP) bf16

    # --- U/V projections: all 3 Cartesian components in ONE MXU pass --------
    # (3, TM, HP) -> (3*TM, HP) is a layout-free leading-dim collapse.
    uv = jnp.dot(nv.reshape(3 * tm, hp), wuv_ref[...],
                 preferred_element_type=f32) + buv_ref[...]
    uv = uv.reshape(3, tm, 2 * hp)
    u = uv[:, :, :hp]                                   # Uv  (3, TM, HP) f32
    v = uv[:, :, hp:]                                   # Vv  (3, TM, HP) f32

    # ||Vv|| over the Cartesian axis and <Uv, Vv>  (pure VPU work, f32).
    vv_norm = jnp.sqrt(jnp.sum(v * v, axis=0))          # (TM, HP)
    inner = jnp.sum(u * v, axis=0)                      # (TM, HP)

    # --- fused MLP: concat([Vv_norm, node_scalar]) @ W1 -> SiLU -> @ W2 -----
    # Lane-dim concat via two unmasked stores into VMEM scratch, then a single
    # K = 2*HP contraction (fills the 256-deep MXU on v6e/v7x).
    cat_ref[:, :hp] = vv_norm.astype(bf16)
    cat_ref[:, hp:] = ns
    h = jax.nn.silu(jnp.dot(cat_ref[...], w1_ref[...],
                            preferred_element_type=f32) + b1_ref[...])
    mlp = jnp.dot(h.astype(bf16), w2_ref[...],
                  preferred_element_type=f32) + b2_ref[...]
    a_vv = mlp[:, :hp]
    a_sv = mlp[:, hp:2 * hp]
    a_ss = mlp[:, 2 * hp:]

    # Gating + residuals (f32), stored back in the activation dtype (bf16).
    ons_ref[...] = (ns.astype(f32) + a_sv * inner + a_ss).astype(ons_ref.dtype)
    onv_ref[...] = (nv.astype(f32) + a_vv[None, :, :] * u).astype(onv_ref.dtype)


# ----------------------------------------------------------------------------
# Parameter prep (done once): pad feature dims to 128-multiples, fuse U|V,
# keep W1 as a single (2*HP, HP) matrix whose row halves line up with the
# in-kernel concat layout, keep matmul weights in bf16 (biases f32).
# ----------------------------------------------------------------------------
def prepare_update_params(raw, node_size):
    H = node_size
    HP = _round_up(H, 128)
    bf16 = jnp.bfloat16

    def pad2(a):
        return jnp.pad(a, ((0, HP - a.shape[0]), (0, HP - a.shape[1])))

    def pad1(a):
        return jnp.pad(a, (0, HP - a.shape[0]))

    wuv = jnp.concatenate([pad2(raw["U_w"]), pad2(raw["V_w"])], axis=1)
    buv = jnp.concatenate([pad1(raw["U_b"]), pad1(raw["V_b"])]).reshape(1, -1)

    # W1 rows: first H act on Vv_norm, next H on node_scalar; pad each half so
    # the padded lane layout of cat([Vv_norm, node_scalar]) matches.
    w1 = jnp.concatenate([pad2(raw["mlp_w1"][:H, :]),
                          pad2(raw["mlp_w1"][H:, :])], axis=0)       # (2HP, HP)
    b1 = pad1(raw["mlp_b1"]).reshape(1, -1)

    w2 = jnp.concatenate([pad2(raw["mlp_w2"][:, i * H:(i + 1) * H])
                          for i in range(3)], axis=1)                # (HP, 3HP)
    b2 = jnp.concatenate([pad1(raw["mlp_b2"][i * H:(i + 1) * H])
                          for i in range(3)]).reshape(1, -1)

    return {
        "wuv": wuv.astype(bf16), "buv": buv.astype(jnp.float32),
        "w1": w1.astype(bf16), "b1": b1.astype(jnp.float32),
        "w2": w2.astype(bf16), "b2": b2.astype(jnp.float32),
    }


# ----------------------------------------------------------------------------
# Node-axis tile selection: biggest (8-aligned) tile up to tile_m with small
# waste in the partial last block (no row padding is ever materialized).
# ----------------------------------------------------------------------------
def _choose_tile(n, tile_m):
    if n <= 256:
        return _round_up(max(n, 8), 8)          # single tile
    tm = _round_up(max(128, min(tile_m, 1024)), 128)
    while tm > 128 and (-n) % tm > tm // 4:     # >25% waste in last tile -> shrink
        tm //= 2
    return tm


# ----------------------------------------------------------------------------
# Wrapper.  node_scalar: (N, H); node_vector: (3, N, H) component-major layout
# (kept resident across a PaiNN stack; convert at the model boundary only).
# ----------------------------------------------------------------------------
def painn_update(params, node_scalar, node_vector, *, tile_m=512):
    N, H = node_scalar.shape
    assert node_vector.shape == (3, N, H)
    HP = params["wuv"].shape[0]
    dtype = node_scalar.dtype

    # Feature padding only if H is not already lane-dense (single copy; for the
    # typical H = 128/256/... case this is a no-op).
    if HP != H:
        node_scalar = jnp.pad(node_scalar, ((0, 0), (0, HP - H)))
        node_vector = jnp.pad(node_vector, ((0, 0), (0, 0), (0, HP - H)))

    TM = _choose_tile(N, tile_m)
    grid = (pl.cdiv(N, TM),)

    # Advisory cost for XLA's scheduler around the custom call.
    flops = N * (12 * HP * HP + 4 * HP * HP + 6 * HP * HP)
    act_bytes = 2 * (N * HP + 3 * N * HP) * jnp.dtype(dtype).itemsize
    w_bytes = sum(int(v.size) * jnp.dtype(v.dtype).itemsize
                  for v in params.values())
    cost = pl.CostEstimate(flops=int(flops),
                           transcendentals=int(2 * N * HP),
                           bytes_accessed=int(act_bytes + w_bytes))

    ons, onv = pl.pallas_call(
        _painn_update_kernel,
        out_shape=(jax.ShapeDtypeStruct((N, HP), dtype),
                   jax.ShapeDtypeStruct((3, N, HP), dtype)),
        grid=grid,
        in_specs=[
            pl.BlockSpec((TM, HP), lambda i: (i, 0)),           # node_scalar
            pl.BlockSpec((3, TM, HP), lambda i: (0, i, 0)),     # node_vector
            pl.BlockSpec((HP, 2 * HP), lambda i: (0, 0)),       # [U_w | V_w]
            pl.BlockSpec((1, 2 * HP), lambda i: (0, 0)),
            pl.BlockSpec((2 * HP, HP), lambda i: (0, 0)),       # W1 (fused K=2H)
            pl.BlockSpec((1, HP), lambda i: (0, 0)),
            pl.BlockSpec((HP, 3 * HP), lambda i: (0, 0)),       # W2
            pl.BlockSpec((1, 3 * HP), lambda i: (0, 0)),
        ],
        out_specs=(
            pl.BlockSpec((TM, HP), lambda i: (i, 0)),
            pl.BlockSpec((3, TM, HP), lambda i: (0, i, 0)),
        ),
        scratch_shapes=[pltpu.VMEM((TM, 2 * HP), jnp.bfloat16)],
        compiler_params=pltpu.CompilerParams(
            dimension_semantics=("parallel",)),
        cost_estimate=cost,
    )(node_scalar, node_vector, params["wuv"], params["buv"],
      params["w1"], params["b1"], params["w2"], params["b2"])

    if HP != H:
        ons = ons[:, :H]
        onv = onv[:, :, :H]
    return ons, onv


# ----------------------------------------------------------------------------
# Pure-JAX f32 reference (mirrors the PyTorch module; (3, N, H) vector layout).
# ----------------------------------------------------------------------------
def painn_update_ref(raw, node_scalar, node_vector):
    ns = node_scalar.astype(jnp.float32)
    nv = node_vector.astype(jnp.float32)                         # (3, N, H)
    Uv = jnp.einsum("dnh,hk->dnk", nv, raw["U_w"]) + raw["U_b"]
    Vv = jnp.einsum("dnh,hk->dnk", nv, raw["V_w"]) + raw["V_b"]
    Vv_norm = jnp.linalg.norm(Vv, axis=0)
    mlp_in = jnp.concatenate([Vv_norm, ns], axis=1)
    h = jax.nn.silu(mlp_in @ raw["mlp_w1"] + raw["mlp_b1"])
    mlp_out = h @ raw["mlp_w2"] + raw["mlp_b2"]
    a_vv, a_sv, a_ss = jnp.split(mlp_out, 3, axis=1)
    inner = jnp.sum(Uv * Vv, axis=0)
    new_s = ns + a_sv * inner + a_ss
    new_v = nv + a_vv[None, :, :] * Uv
    return new_s, new_v


# ----------------------------------------------------------------------------
if __name__ == "__main__":
    node_size = 128          # typical PaiNN hidden size; lane-dense (HP == H)
    num_nodes = 300          # not a tile multiple: exercises the partial last block

    key = jax.random.PRNGKey(0)
    kw = jax.random.split(key, 10)

    def lin(k1, k2, fan_in, fan_out):
        w = jax.random.normal(k1, (fan_in, fan_out), jnp.float32) / fan_in ** 0.5
        b = jax.random.normal(k2, (fan_out,), jnp.float32) * 0.1
        return w, b

    raw = {}
    raw["U_w"], raw["U_b"] = lin(kw[0], kw[1], node_size, node_size)
    raw["V_w"], raw["V_b"] = lin(kw[2], kw[3], node_size, node_size)
    raw["mlp_w1"], raw["mlp_b1"] = lin(kw[4], kw[5], 2 * node_size, node_size)
    raw["mlp_w2"], raw["mlp_b2"] = lin(kw[6], kw[7], node_size, 3 * node_size)

    # Activations live in bf16 and in the (3, N, H) resident layout, exactly as
    # they would inside a bf16 PaiNN stack (PyTorch's (N, 3, H) layout is only
    # used at the model boundary).
    node_scalar = jax.random.normal(kw[8], (num_nodes, node_size),
                                    jnp.float32).astype(jnp.bfloat16)
    node_vector = jax.random.normal(kw[9], (3, num_nodes, node_size),
                                    jnp.float32).astype(jnp.bfloat16)

    params = prepare_update_params(raw, node_size)

    fn = jax.jit(painn_update)
    out_scalar, out_vector = fn(params, node_scalar, node_vector)
    jax.block_until_ready((out_scalar, out_vector))

    ref_scalar, ref_vector = painn_update_ref(raw, node_scalar, node_vector)

    def rel_l2(a, b):
        a = a.astype(jnp.float32)
        b = b.astype(jnp.float32)
        return float(jnp.linalg.norm(a - b) / (jnp.linalg.norm(b) + 1e-12))

    assert out_scalar.shape == (num_nodes, node_size)
    assert out_vector.shape == (3, num_nodes, node_size)
    err_s = rel_l2(out_scalar, ref_scalar)
    err_v = rel_l2(out_vector, ref_vector)
    # bf16 weights/activations + bf16 output store vs f32 reference.
    assert err_s < 3e-2 and err_v < 3e-2, (err_s, err_v)

    print("KERNEL_OK")
</pallas_src>

<mosaic_0001>
module attributes {stable_mosaic.version = 11 : i64} {
  func.func @_painn_update_kernel(%arg0: i32, %arg1: memref<128x128xbf16, #tpu.memory_space<vmem>>, %arg2: memref<3x128x128xbf16, #tpu.memory_space<vmem>>, %arg3: memref<128x256xbf16, #tpu.memory_space<vmem>>, %arg4: memref<1x256xf32, #tpu.memory_space<vmem>>, %arg5: memref<256x128xbf16, #tpu.memory_space<vmem>>, %arg6: memref<1x128xf32, #tpu.memory_space<vmem>>, %arg7: memref<128x384xbf16, #tpu.memory_space<vmem>>, %arg8: memref<1x384xf32, #tpu.memory_space<vmem>>, %arg9: memref<128x128xbf16, #tpu.memory_space<vmem>>, %arg10: memref<3x128x128xbf16, #tpu.memory_space<vmem>>, %arg11: memref<128x256xbf16, #tpu.memory_space<vmem>>) attributes {dimension_semantics = [#tpu.dimension_semantics<parallel>], iteration_bounds = array<i64: 3>, scalar_prefetch = 0 : i64, scratch_operands = 1 : i64, tpu.core_type = #tpu.core_type<tc>, window_params = [{transform_indices = @transform_0, window_bounds = array<i64: 128, 128>}, {transform_indices = @transform_1, window_bounds = array<i64: 3, 128, 128>}, {pipeline_mode = #tpu.pipeline_mode<synchronous>, transform_indices = @transform_2, window_bounds = array<i64: 128, 256>}, {pipeline_mode = #tpu.pipeline_mode<synchronous>, transform_indices = @transform_3, window_bounds = array<i64: 1, 256>}, {pipeline_mode = #tpu.pipeline_mode<synchronous>, transform_indices = @transform_4, window_bounds = array<i64: 256, 128>}, {pipeline_mode = #tpu.pipeline_mode<synchronous>, transform_indices = @transform_5, window_bounds = array<i64: 1, 128>}, {pipeline_mode = #tpu.pipeline_mode<synchronous>, transform_indices = @transform_6, window_bounds = array<i64: 128, 384>}, {pipeline_mode = #tpu.pipeline_mode<synchronous>, transform_indices = @transform_7, window_bounds = array<i64: 1, 384>}, {transform_indices = @transform_8, window_bounds = array<i64: 128, 128>}, {transform_indices = @transform_9, window_bounds = array<i64: 3, 128, 128>}]} {
    %c0 = arith.constant 0 : index
    %c0_0 = arith.constant 0 : index
    %0 = vector.load %arg1[%c0, %c0_0] : memref<128x128xbf16, #tpu.memory_space<vmem>>, vector<128x128xbf16>
    %c0_1 = arith.constant 0 : index
    %c0_2 = arith.constant 0 : index
    %c0_3 = arith.constant 0 : index
    %1 = vector.load %arg2[%c0_1, %c0_2, %c0_3] : memref<3x128x128xbf16, #tpu.memory_space<vmem>>, vector<3x128x128xbf16>
    %2 = vector.shape_cast %1 : vector<3x128x128xbf16> to vector<384x128xbf16>
    %c0_4 = arith.constant 0 : index
    %c0_5 = arith.constant 0 : index
    %3 = vector.load %arg3[%c0_4, %c0_5] : memref<128x256xbf16, #tpu.memory_space<vmem>>, vector<128x256xbf16>
    %cst = arith.constant dense<0.000000e+00> : vector<384x256xf32>
    %4 = tpu.matmul %2, %3, %cst {dimension_numbers = #tpu.dot_dimension_numbers<[1], [0], [0], [1], [0, 0, 1, 1], [], []>} : vector<384x128xbf16>, vector<128x256xbf16>, vector<384x256xf32> -> vector<384x256xf32>
    %c0_6 = arith.constant 0 : index
    %c0_7 = arith.constant 0 : index
    %5 = vector.load %arg4[%c0_6, %c0_7] : memref<1x256xf32, #tpu.memory_space<vmem>>, vector<1x256xf32>
    %6 = vector.broadcast %5 : vector<1x256xf32> to vector<384x256xf32>
    %7 = arith.addf %4, %6 : vector<384x256xf32>
    %8 = vector.shape_cast %7 : vector<384x256xf32> to vector<3x128x256xf32>
    %9 = vector.extract_strided_slice %8 {offsets = [0, 0, 0], sizes = [3, 128, 128], strides = [1, 1, 1]} : vector<3x128x256xf32> to vector<3x128x128xf32>
    %10 = vector.extract_strided_slice %8 {offsets = [0, 0, 128], sizes = [3, 128, 128], strides = [1, 1, 1]} : vector<3x128x256xf32> to vector<3x128x128xf32>
    %11 = arith.mulf %10, %10 : vector<3x128x128xf32>
    %cst_8 = arith.constant dense<0.000000e+00> : vector<128x128xf32>
    %12 = vector.multi_reduction <add>, %11, %cst_8 [0] : vector<3x128x128xf32> to vector<128x128xf32>
    %13 = math.sqrt %12 : vector<128x128xf32>
    %14 = arith.mulf %9, %10 : vector<3x128x128xf32>
    %cst_9 = arith.constant dense<0.000000e+00> : vector<128x128xf32>
    %15 = vector.multi_reduction <add>, %14, %cst_9 [0] : vector<3x128x128xf32> to vector<128x128xf32>
    %16 = arith.truncf %13 : vector<128x128xf32> to vector<128x128xbf16>
    %c0_10 = arith.constant 0 : index
    %c0_11 = arith.constant 0 : index
    %17 = vector.load %arg11[%c0_10, %c0_11] : memref<128x256xbf16, #tpu.memory_space<vmem>>, vector<128x128xbf16>
    tpu.vector_store %arg11[%c0_10, %c0_11], %16 {strides = array<i32>} : memref<128x256xbf16, #tpu.memory_space<vmem>>, vector<128x128xbf16>,
    %c0_12 = arith.constant 0 : index
    %c128 = arith.constant 128 : index
    %18 = vector.load %arg11[%c0_12, %c128] : memref<128x256xbf16, #tpu.memory_space<vmem>>, vector<128x128xbf16>
    tpu.vector_store %arg11[%c0_12, %c128], %0 {strides = array<i32>} : memref<128x256xbf16, #tpu.memory_space<vmem>>, vector<128x128xbf16>,
    %c0_13 = arith.constant 0 : index
    %c0_14 = arith.constant 0 : index
    %19 = vector.load %arg11[%c0_13, %c0_14] : memref<128x256xbf16, #tpu.memory_space<vmem>>, vector<128x256xbf16>
    %c0_15 = arith.constant 0 : index
    %c0_16 = arith.constant 0 : index
    %20 = vector.load %arg5[%c0_15, %c0_16] : memref<256x128xbf16, #tpu.memory_space<vmem>>, vector<256x128xbf16>
    %cst_17 = arith.constant dense<0.000000e+00> : vector<128x128xf32>
    %21 = tpu.matmul %19, %20, %cst_17 {dimension_numbers = #tpu.dot_dimension_numbers<[1], [0], [0], [1], [0, 0, 1, 1], [], []>} : vector<128x256xbf16>, vector<256x128xbf16>, vector<128x128xf32> -> vector<128x128xf32>
    %c0_18 = arith.constant 0 : index
    %c0_19 = arith.constant 0 : index
    %22 = vector.load %arg6[%c0_18, %c0_19] : memref<1x128xf32, #tpu.memory_space<vmem>>, vector<1x128xf32>
    %23 = vector.broadcast %22 : vector<1x128xf32> to vector<128x128xf32>
    %24 = arith.addf %21, %23 : vector<128x128xf32>
    %25 = arith.negf %24 : vector<128x128xf32>
    %26 = math.exp %25 : vector<128x128xf32>
    %cst_20 = arith.constant 1.000000e+00 : f32
    %27 = vector.broadcast %cst_20 : f32 to vector<128x128xf32>
    %28 = arith.addf %27, %26 : vector<128x128xf32>
    %29 = arith.divf %27, %28 : vector<128x128xf32>
    %30 = arith.mulf %24, %29 : vector<128x128xf32>
    %31 = arith.truncf %30 : vector<128x128xf32> to vector<128x128xbf16>
    %c0_21 = arith.constant 0 : index
    %c0_22 = arith.constant 0 : index
    %32 = vector.load %arg7[%c0_21, %c0_22] : memref<128x384xbf16, #tpu.memory_space<vmem>>, vector<128x384xbf16>
    %cst_23 = arith.constant dense<0.000000e+00> : vector<128x384xf32>
    %33 = tpu.matmul %31, %32, %cst_23 {dimension_numbers = #tpu.dot_dimension_numbers<[1], [0], [0], [1], [0, 0, 1, 1], [], []>} : vector<128x128xbf16>, vector<128x384xbf16>, vector<128x384xf32> -> vector<128x384xf32>
    %c0_24 = arith.constant 0 : index
    %c0_25 = arith.constant 0 : index
    %34 = vector.load %arg8[%c0_24, %c0_25] : memref<1x384xf32, #tpu.memory_space<vmem>>, vector<1x384xf32>
    %35 = vector.broadcast %34 : vector<1x384xf32> to vector<128x384xf32>
    %36 = arith.addf %33, %35 : vector<128x384xf32>
    %37 = vector.extract_strided_slice %36 {offsets = [0, 0], sizes = [128, 128], strides = [1, 1]} : vector<128x384xf32> to vector<128x128xf32>
    %38 = vector.extract_strided_slice %36 {offsets = [0, 128], sizes = [128, 128], strides = [1, 1]} : vector<128x384xf32> to vector<128x128xf32>
    %39 = vector.extract_strided_slice %36 {offsets = [0, 256], sizes = [128, 128], strides = [1, 1]} : vector<128x384xf32> to vector<128x128xf32>
    %40 = arith.extf %0 : vector<128x128xbf16> to vector<128x128xf32>
    %41 = arith.mulf %38, %15 : vector<128x128xf32>
    %42 = arith.addf %40, %41 : vector<128x128xf32>
    %43 = arith.addf %42, %39 : vector<128x128xf32>
    %44 = arith.truncf %43 : vector<128x128xf32> to vector<128x128xbf16>
    %c0_26 = arith.constant 0 : index
    %c0_27 = arith.constant 0 : index
    %45 = vector.load %arg9[%c0_26, %c0_27] : memref<128x128xbf16, #tpu.memory_space<vmem>>, vector<128x128xbf16>
    tpu.vector_store %arg9[%c0_26, %c0_27], %44 {strides = array<i32>} : memref<128x128xbf16, #tpu.memory_space<vmem>>, vector<128x128xbf16>,
    %46 = arith.extf %1 : vector<3x128x128xbf16> to vector<3x128x128xf32>
    %47 = vector.shape_cast %37 : vector<128x128xf32> to vector<1x128x128xf32>
    %48 = vector.broadcast %47 : vector<1x128x128xf32> to vector<3x128x128xf32>
    %49 = arith.mulf %48, %9 : vector<3x128x128xf32>
    %50 = arith.addf %46, %49 : vector<3x128x128xf32>
    %51 = arith.truncf %50 : vector<3x128x128xf32> to vector<3x128x128xbf16>
    %c0_28 = arith.constant 0 : index
    %c0_29 = arith.constant 0 : index
    %c0_30 = arith.constant 0 : index
    %52 = vector.load %arg10[%c0_28, %c0_29, %c0_30] : memref<3x128x128xbf16, #tpu.memory_space<vmem>>, vector<3x128x128xbf16>
    tpu.vector_store %arg10[%c0_28, %c0_29, %c0_30], %51 {strides = array<i32>} : memref<3x128x128xbf16, #tpu.memory_space<vmem>>, vector<3x128x128xbf16>,
    return
  }
  func.func @transform_0(%arg0: i32) -> (i32, i32) {
    %c0_i32 = arith.constant 0 : i32
    %c0_i32_0 = arith.constant 0 : i32
    return %arg0, %c0_i32 : i32, i32
  }
  func.func @transform_1(%arg0: i32) -> (i32, i32, i32) {
    %c0_i32 = arith.constant 0 : i32
    %c0_i32_0 = arith.constant 0 : i32
    %c0_i32_1 = arith.constant 0 : i32
    return %c0_i32, %arg0, %c0_i32_0 : i32, i32, i32
  }
  func.func @transform_2(%arg0: i32) -> (i32, i32) {
    %c0_i32 = arith.constant 0 : i32
    %c0_i32_0 = arith.constant 0 : i32
    %c0_i32_1 = arith.constant 0 : i32
    return %c0_i32, %c0_i32_0 : i32, i32
  }
  func.func @transform_3(%arg0: i32) -> (i32, i32) {
    %c0_i32 = arith.constant 0 : i32
    %c0_i32_0 = arith.constant 0 : i32
    %c0_i32_1 = arith.constant 0 : i32
    return %c0_i32, %c0_i32_0 : i32, i32
  }
  func.func @transform_4(%arg0: i32) -> (i32, i32) {
    %c0_i32 = arith.constant 0 : i32
    %c0_i32_0 = arith.constant 0 : i32
    %c0_i32_1 = arith.constant 0 : i32
    return %c0_i32, %c0_i32_0 : i32, i32
  }
  func.func @transform_5(%arg0: i32) -> (i32, i32) {
    %c0_i32 = arith.constant 0 : i32
    %c0_i32_0 = arith.constant 0 : i32
    %c0_i32_1 = arith.constant 0 : i32
    return %c0_i32, %c0_i32_0 : i32, i32
  }
  func.func @transform_6(%arg0: i32) -> (i32, i32) {
    %c0_i32 = arith.constant 0 : i32
    %c0_i32_0 = arith.constant 0 : i32
    %c0_i32_1 = arith.constant 0 : i32
    return %c0_i32, %c0_i32_0 : i32, i32
  }
  func.func @transform_7(%arg0: i32) -> (i32, i32) {
    %c0_i32 = arith.constant 0 : i32
    %c0_i32_0 = arith.constant 0 : i32
    %c0_i32_1 = arith.constant 0 : i32
    return %c0_i32, %c0_i32_0 : i32, i32
  }
  func.func @transform_8(%arg0: i32) -> (i32, i32) {
    %c0_i32 = arith.constant 0 : i32
    %c0_i32_0 = arith.constant 0 : i32
    return %arg0, %c0_i32 : i32, i32
  }
  func.func @transform_9(%arg0: i32) -> (i32, i32, i32) {
    %c0_i32 = arith.constant 0 : i32
    %c0_i32_0 = arith.constant 0 : i32
    %c0_i32_1 = arith.constant 0 : i32
    return %c0_i32, %arg0, %c0_i32_0 : i32, i32, i32
  }
}

</mosaic_0001>

<llo_original>
// kernel: painn_update.1
$region0: #{painn_update.1}
  #allocation0 [shape = 'u32[]', space=smem, size = 0x4, offset = 0x4, fixed_abs, tag = 'smem constant byte address 0x4 - core index']
  #allocation1 [shape = 'u32[144,128]{1,0:T(1,128)}', space=vmem, size = 0x12000, scoped, tag = 'internal scratch']
  #allocation2 [shape = 'bf16[128,256]{1,0:T(8,128)(2,1)}', space=vmem, size = 0x10000, scoped, tag = 'scratch operand']
  #allocation18 [shape = 's32[]', space=sflag, size = 0x4, offset = 0, fixed_abs, tag = 'sflag constant byte address 0x0 - dummy sync flag']
  #allocation20 [shape = 's32[]', space=sflag, size = 0x4, offset = 0, fixed_abs, tag = 'sflag constant byte address 0x0 - dummy sync flag']
  %s0 = inlined_call_operand.hbm [shape: bf16[300,128], index: 0, kind: input, shape index: {}]
  %s1 = inlined_call_operand.hbm [shape: bf16[3,300,128], index: 1, kind: input, shape index: {}]
  %s2 = inlined_call_operand.hbm [shape: bf16[128,256], index: 2, kind: input, shape index: {}]
  %s3 = inlined_call_operand.vmem [shape: f32[1,256], index: 3, kind: input, shape index: {}]
  %s4 = inlined_call_operand.hbm [shape: bf16[256,128], index: 4, kind: input, shape index: {}]
  %s5 = inlined_call_operand.hbm [shape: f32[1,128], index: 5, kind: input, shape index: {}]
  %s6 = inlined_call_operand.hbm [shape: bf16[128,384], index: 6, kind: input, shape index: {}]
  %s7 = inlined_call_operand.hbm [shape: f32[1,384], index: 7, kind: input, shape index: {}]
  %s8 = inlined_call_operand.hbm [shape: bf16[300,128], index: 8, kind: output, shape index: {0}]
  %s9 = inlined_call_operand.hbm [shape: bf16[3,300,128], index: 9, kind: output, shape index: {1}]
  %10 = xla_tuple %s8, %s9
  %s11 = sld [smem:[#allocation0]]
  $region101: #{painn_update.1} parent=0
    _
  %s13 = ssub.s32 1, %s11
  %s14 = scalar_select 0, %s13, %s11
  $region1: #{painn_update.1} parent=0
    #allocation3 [shape = 'u8[65536]{0}', space=vmem, size = 0x10000, scoped, tag = 'input window, operand 0']
    #allocation4 [shape = 's32[2]{0}', space=sflag, size = 0x8, scoped, tag = 'scoped memory for painn_update.1']
    #allocation5 [shape = 's32[2]{0}', space=sflag, size = 0x8, scoped, tag = 'scoped memory for painn_update.1']
    #allocation6 [shape = 'u8[196608]{0}', space=vmem, size = 0x30000, scoped, tag = 'input window, operand 1']
    #allocation7 [shape = 's32[2]{0}', space=sflag, size = 0x8, scoped, tag = 'scoped memory for painn_update.1']
    #allocation8 [shape = 'u8[65536]{0}', space=vmem, size = 0x10000, scoped, tag = 'input window, operand 2, single buffered']
    #allocation9 [shape = 'u8[65536]{0}', space=vmem, size = 0x10000, scoped, tag = 'input window, operand 4, single buffered']
    #allocation10 [shape = 's32[1]{0}', space=sflag, size = 0x4, scoped, tag = 'scoped memory for painn_update.1']
    #allocation11 [shape = 'u8[512]{0}', space=vmem, size = 0x400, scoped, tag = 'input window, operand 5, single buffered']
    #allocation12 [shape = 'u8[98304]{0}', space=vmem, size = 0x18000, scoped, tag = 'input window, operand 6, single buffered']
    #allocation13 [shape = 's32[1]{0}', space=sflag, size = 0x4, scoped, tag = 'scoped memory for painn_update.1']
    #allocation14 [shape = 'u8[1536]{0}', space=vmem, size = 0x800, scoped, tag = 'input window, operand 7, single buffered']
    #allocation15 [shape = 'u8[65536]{0}', space=vmem, size = 0x10000, scoped, tag = 'output window, operand 0']
    #allocation16 [shape = 'u8[196608]{0}', space=vmem, size = 0x30000, scoped, tag = 'output window, operand 1']
    #allocation17 [shape = 's32[2]{0}', space=sflag, size = 0x8, scoped, tag = 'scoped memory for painn_update.1']
    %15 = vsyncpa [#allocation4], 0
    %s16 = scalar_lea.sflag [#allocation4], 1
    %17 = vsyncpa %s16, 0
    %18 = vsyncpa [#allocation7], 0
    %s19 = scalar_lea.sflag [#allocation7], 1
    %20 = vsyncpa %s19, 0
    %21 = vsyncpa [#allocation10], 0
    %22 = vsyncpa [#allocation13], 0
    %23 = vsyncpa [#allocation5], 0
    %s24 = scalar_lea.sflag [#allocation5], 1
    %25 = vsyncpa %s24, 0
    %26 = vsyncpa [#allocation17], 0
    %s27 = scalar_lea.sflag [#allocation17], 1
    %28 = vsyncpa %s27, 0
    loop: start=0, step=1, limit=5
    $region2: #{painn_update.1} parent=1 // loop_pre_header
      _
    $region3: #{painn_update.1} parent=1 // loop_header
      %s30 = sphi 0, %s34
      %p31 = scmp.ge.s32.totalorder %s30, 5
      %s40 = sphi 0, %s42
      %s43 = sphi 0, %s40
      %s44 = sphi 0, %s43
      %s60 = sphi 0, %s44
      %s66 = sphi 0, %s68
      %s69 = sphi 0, %s66
      %s70 = sphi 0, %s69
      %s86 = sphi 0, %s70
      %s90 = sphi 0, %s90
      %s92 = sphi 0, %s90
      %s93 = sphi 0, %s92
      %s107 = sphi 0, %s93
      %s111 = sphi 0, %s111
      %s113 = sphi 0, %s111
      %s114 = sphi 0, %s113
      %s128 = sphi 0, %s114
      %s132 = sphi 0, %s132
      %s134 = sphi 0, %s132
      %s135 = sphi 0, %s134
      %s149 = sphi 0, %s135
      %s153 = sphi 0, %s153
      %s155 = sphi 0, %s153
      %s156 = sphi 0, %s155
      %s170 = sphi 0, %s156
      %s174 = sphi 0, %s174
      %s176 = sphi 0, %s174
      %s177 = sphi 0, %s176
      %s191 = sphi 0, %s177
      %s195 = sphi 0, %s195
      %s197 = sphi 0, %s195
      %s198 = sphi 0, %s197
      %s212 = sphi 0, %s198
      %s218 = sphi 0, %s220
      %s221 = sphi 0, %s218
      %s222 = sphi 0, %s221
      %s238 = sphi 0, %s222
      %s244 = sphi 0, %s246
      %s247 = sphi 0, %s244
      %s248 = sphi 0, %s247
      %s264 = sphi 0, %s248
    $region4: #{painn_update.1} parent=1 // loop_header_branch
      %33 = sbr.rel (%p31) target = $region8
    $region5: #{painn_update.1} parent=1 // loop_body
      %s35 = ssub.s32 %s30, 1
      %s36 = ssub.s32 %s30, 2
      %s37 = sadd.s32 %s30, 1
      %s38 = ssub.s32 %s30, %s37
      %p39 = scmp.eq.s32.totalorder %s38, 0
      %s41 = sadd.s32 %s40, 1
      %s42 = scalar_select %p39, %s40, %s41
      %p45 = pneg %p39
      %p46 = scmp.eq.s32.totalorder %s30, 2
      %p47 = por %p45, %p46
      %p48 = scmp.ne.s32.totalorder %s40, %s43
      %p49 = scmp.eq.s32.totalorder %s30, 0
      %p50 = por %p48, %p49
      %p51 = scmp.ne.s32.totalorder %s40, %s43
      %p52 = scmp.eq.s32.totalorder %s35, 2
      %p53 = por %p51, %p52
      %p54 = scmp.ne.s32.totalorder %s43, %s44
      %p55 = scmp.eq.s32.totalorder %s35, 0
      %p56 = por %p54, %p55
      %p57 = scmp.ne.s32.totalorder %s43, %s44
      %p58 = scmp.eq.s32.totalorder %s36, 2
      %p59 = por %p57, %p58
      %p61 = scmp.ne.s32.totalorder %s44, %s60
      %p62 = scmp.eq.s32.totalorder %s36, 0
      %p63 = por %p61, %p62
      %s64 = ssub.s32 %s30, %s37
      %p65 = scmp.eq.s32.totalorder %s64, 0
      %s67 = sadd.s32 %s66, 1
      %s68 = scalar_select %p65, %s66, %s67
      %p71 = pneg %p65
      %p72 = scmp.eq.s32.totalorder %s30, 2
      %p73 = por %p71, %p72
      %p74 = scmp.ne.s32.totalorder %s66, %s69
      %p75 = scmp.eq.s32.totalorder %s30, 0
      %p76 = por %p74, %p75
      %p77 = scmp.ne.s32.totalorder %s66, %s69
      %p78 = scmp.eq.s32.totalorder %s35, 2
      %p79 = por %p77, %p78
      %p80 = scmp.ne.s32.totalorder %s69, %s70
      %p81 = scmp.eq.s32.totalorder %s35, 0
      %p82 = por %p80, %p81
      %p83 = scmp.ne.s32.totalorder %s69, %s70
      %p84 = scmp.eq.s32.totalorder %s36, 2
      %p85 = por %p83, %p84
      %p87 = scmp.ne.s32.totalorder %s70, %s86
      %p88 = scmp.eq.s32.totalorder %s36, 0
      %p89 = por %p87, %p88
      %s91 = sadd.s32 %s90, 1
      %p94 = scmp.eq.s32.totalorder %s30, 2
      %p95 = scmp.ne.s32.totalorder %s90, %s92
      %p96 = scmp.eq.s32.totalorder %s30, 0
      %p97 = por %p95, %p96
      %p98 = scmp.ne.s32.totalorder %s90, %s92
      %p99 = scmp.eq.s32.totalorder %s35, 2
      %p100 = por %p98, %p99
      %p101 = scmp.ne.s32.totalorder %s92, %s93
      %p102 = scmp.eq.s32.totalorder %s35, 0
      %p103 = por %p101, %p102
      %p104 = scmp.ne.s32.totalorder %s92, %s93
      %p105 = scmp.eq.s32.totalorder %s36, 2
      %p106 = por %p104, %p105
      %p108 = scmp.ne.s32.totalorder %s93, %s107
      %p109 = scmp.eq.s32.totalorder %s36, 0
      %p110 = por %p108, %p109
      %s112 = sadd.s32 %s111, 1
      %p115 = scmp.eq.s32.totalorder %s30, 2
      %p116 = scmp.ne.s32.totalorder %s111, %s113
      %p117 = scmp.eq.s32.totalorder %s30, 0
      %p118 = por %p116, %p117
      %p119 = scmp.ne.s32.totalorder %s111, %s113
      %p120 = scmp.eq.s32.totalorder %s35, 2
      %p121 = por %p119, %p120
      %p122 = scmp.ne.s32.totalorder %s113, %s114
      %p123 = scmp.eq.s32.totalorder %s35, 0
      %p124 = por %p122, %p123
      %p125 = scmp.ne.s32.totalorder %s113, %s114
      %p126 = scmp.eq.s32.totalorder %s36, 2
      %p127 = por %p125, %p126
      %p129 = scmp.ne.s32.totalorder %s114, %s128
      %p130 = scmp.eq.s32.totalorder %s36, 0
      %p131 = por %p129, %p130
      %s133 = sadd.s32 %s132, 1
      %p136 = scmp.eq.s32.totalorder %s30, 2
      %p137 = scmp.ne.s32.totalorder %s132, %s134
      %p138 = scmp.eq.s32.totalorder %s30, 0
      %p139 = por %p137, %p138
      %p140 = scmp.ne.s32.totalorder %s132, %s134
      %p141 = scmp.eq.s32.totalorder %s35, 2
      %p142 = por %p140, %p141
      %p143 = scmp.ne.s32.totalorder %s134, %s135
      %p144 = scmp.eq.s32.totalorder %s35, 0
      %p145 = por %p143, %p144
      %p146 = scmp.ne.s32.totalorder %s134, %s135
      %p147 = scmp.eq.s32.totalorder %s36, 2
      %p148 = por %p146, %p147
      %p150 = scmp.ne.s32.totalorder %s135, %s149
      %p151 = scmp.eq.s32.totalorder %s36, 0
      %p152 = por %p150, %p151
      %s154 = sadd.s32 %s153, 1
      %p157 = scmp.eq.s32.totalorder %s30, 2
      %p158 = scmp.ne.s32.totalorder %s153, %s155
      %p159 = scmp.eq.s32.totalorder %s30, 0
      %p160 = por %p158, %p159
      %p161 = scmp.ne.s32.totalorder %s153, %s155
      %p162 = scmp.eq.s32.totalorder %s35, 2
      %p163 = por %p161, %p162
      %p164 = scmp.ne.s32.totalorder %s155, %s156
      %p165 = scmp.eq.s32.totalorder %s35, 0
      %p166 = por %p164, %p165
      %p167 = scmp.ne.s32.totalorder %s155, %s156
      %p168 = scmp.eq.s32.totalorder %s36, 2
      %p169 = por %p167, %p168
      %p171 = scmp.ne.s32.totalorder %s156, %s170
      %p172 = scmp.eq.s32.totalorder %s36, 0
      %p173 = por %p171, %p172
      %s175 = sadd.s32 %s174, 1
      %p178 = scmp.eq.s32.totalorder %s30, 2
      %p179 = scmp.ne.s32.totalorder %s174, %s176
      %p180 = scmp.eq.s32.totalorder %s30, 0
      %p181 = por %p179, %p180
      %p182 = scmp.ne.s32.totalorder %s174, %s176
      %p183 = scmp.eq.s32.totalorder %s35, 2
      %p184 = por %p182, %p183
      %p185 = scmp.ne.s32.totalorder %s176, %s177
      %p186 = scmp.eq.s32.totalorder %s35, 0
      %p187 = por %p185, %p186
      %p188 = scmp.ne.s32.totalorder %s176, %s177
      %p189 = scmp.eq.s32.totalorder %s36, 2
      %p190 = por %p188, %p189
      %p192 = scmp.ne.s32.totalorder %s177, %s191
      %p193 = scmp.eq.s32.totalorder %s36, 0
      %p194 = por %p192, %p193
      %s196 = sadd.s32 %s195, 1
      %p199 = scmp.eq.s32.totalorder %s30, 2
      %p200 = scmp.ne.s32.totalorder %s195, %s197
      %p201 = scmp.eq.s32.totalorder %s30, 0
      %p202 = por %p200, %p201
      %p203 = scmp.ne.s32.totalorder %s195, %s197
      %p204 = scmp.eq.s32.totalorder %s35, 2
      %p205 = por %p203, %p204
      %p206 = scmp.ne.s32.totalorder %s197, %s198
      %p207 = scmp.eq.s32.totalorder %s35, 0
      %p208 = por %p206, %p207
      %p209 = scmp.ne.s32.totalorder %s197, %s198
      %p210 = scmp.eq.s32.totalorder %s36, 2
      %p211 = por %p209, %p210
      %p213 = scmp.ne.s32.totalorder %s198, %s212
      %p214 = scmp.eq.s32.totalorder %s36, 0
      %p215 = por %p213, %p214
      %s216 = ssub.s32 %s30, %s37
      %p217 = scmp.eq.s32.totalorder %s216, 0
      %s219 = sadd.s32 %s218, 1
      %s220 = scalar_select %p217, %s218, %s219
      %p223 = pneg %p217
      %p224 = scmp.eq.s32.totalorder %s30, 2
      %p225 = por %p223, %p224
      %p226 = scmp.ne.s32.totalorder %s218, %s221
      %p227 = scmp.eq.s32.totalorder %s30, 0
      %p228 = por %p226, %p227
      %p229 = scmp.ne.s32.totalorder %s218, %s221
      %p230 = scmp.eq.s32.totalorder %s35, 2
      %p231 = por %p229, %p230
      %p232 = scmp.ne.s32.totalorder %s221, %s222
      %p233 = scmp.eq.s32.totalorder %s35, 0
      %p234 = por %p232, %p233
      %p235 = scmp.ne.s32.totalorder %s221, %s222
      %p236 = scmp.eq.s32.totalorder %s36, 2
      %p237 = por %p235, %p236
      %p239 = scmp.ne.s32.totalorder %s222, %s238
      %p240 = scmp.eq.s32.totalorder %s36, 0
      %p241 = por %p239, %p240
      %s242 = ssub.s32 %s30, %s37
      %p243 = scmp.eq.s32.totalorder %s242, 0
      %s245 = sadd.s32 %s244, 1
      %s246 = scalar_select %p243, %s244, %s245
      %p249 = pneg %p243
      %p250 = scmp.eq.s32.totalorder %s30, 2
      %p251 = por %p249, %p250
      %p252 = scmp.ne.s32.totalorder %s244, %s247
      %p253 = scmp.eq.s32.totalorder %s30, 0
      %p254 = por %p252, %p253
      %p255 = scmp.ne.s32.totalorder %s244, %s247
      %p256 = scmp.eq.s32.totalorder %s35, 2
      %p257 = por %p255, %p256
      %p258 = scmp.ne.s32.totalorder %s247, %s248
      %p259 = scmp.eq.s32.totalorder %s35, 0
      %p260 = por %p258, %p259
      %p261 = scmp.ne.s32.totalorder %s247, %s248
      %p262 = scmp.eq.s32.totalorder %s36, 2
      %p263 = por %p261, %p262
      %p265 = scmp.ne.s32.totalorder %s248, %s264
      %p266 = scmp.eq.s32.totalorder %s36, 0
      %p267 = por %p265, %p266
      %p268 = scmp.le.s32.totalorder 1, %s30
      %p269 = scmp.lt.s32.totalorder %s30, 4
      %p270 = pnand %p268, %p269
      %p271 = pneg %p270
      // Predicated region
      $region9: #{painn_update.1} parent=5 // pred_check
        _
      $region10: #{painn_update.1} parent=5 // pred_check_branch
        %273 = sbr.rel (%p270) target = $region12
      $region11: #{painn_update.1} parent=5 // pred_region
        %s274 = ssub.s32 %s30, 1
        // Predicated region
        $region13: #{painn_update.1} parent=11 // pred_check
          %p275 = pneg %p103
        $region14: #{painn_update.1} parent=11 // pred_check_branch
          %277 = sbr.rel (%p275) target = $region16
        $region15: #{painn_update.1} parent=11 // pred_region
          %s279 = ssub.s32 2048, 2048
          %280 = vsyncadd [#allocation7], %s279
          %s281 = sshll.u32 [#allocation8], 4
          %s282 = int_to_ptr.vmem [resolvable:$true] %s281
          %287 = dma.hbm_to_vmem [thread:$0]  %s2, 2048, %s282, [#allocation7], 128, 128, 8
        $region16: #{painn_update.1} parent=11 // pred_fallthru
          _
        // Predicated region
        $region17: #{painn_update.1} parent=11 // pred_check
          %p288 = pneg %p124
        $region18: #{painn_update.1} parent=11 // pred_check_branch
          %290 = sbr.rel (%p288) target = $region20
        $region19: #{painn_update.1} parent=11 // pred_region
          _
        $region20: #{painn_update.1} parent=11 // pred_fallthru
          _
        // Predicated region
        $region21: #{painn_update.1} parent=11 // pred_check
          %p291 = pneg %p145
        $region22: #{painn_update.1} parent=11 // pred_check_branch
          %293 = sbr.rel (%p291) target = $region24
        $region23: #{painn_update.1} parent=11 // pred_region
          %s295 = ssub.s32 2048, 2048
          %296 = vsyncadd [#allocation10], %s295
          %s297 = sshll.u32 [#allocation9], 4
          %s298 = int_to_ptr.vmem [resolvable:$true] %s297
          %303 = dma.hbm_to_vmem [thread:$0]  %s4, 2048, %s298, [#allocation10], 64, 64, 4
        $region24: #{painn_update.1} parent=11 // pred_fallthru
          _
        // Predicated region
        $region25: #{painn_update.1} parent=11 // pred_check
          %p304 = pneg %p166
        $region26: #{painn_update.1} parent=11 // pred_check_branch
          %306 = sbr.rel (%p304) target = $region28
        $region27: #{painn_update.1} parent=11 // pred_region
          %s308 = ssub.s32 16, 16
          %309 = vsyncadd [#allocation10], %s308
          %s311 = sshll.u32 [#allocation11], 4
          %s312 = int_to_ptr.vmem [resolvable:$true] %s311
          %314 = dma.hbm_to_vmem [thread:$0]  %s5, 16, %s312, [#allocation10]
        $region28: #{painn_update.1} parent=11 // pred_fallthru
          _
        // Predicated region
        $region29: #{painn_update.1} parent=11 // pred_check
          %p315 = pneg %p187
        $region30: #{painn_update.1} parent=11 // pred_check_branch
          %317 = sbr.rel (%p315) target = $region32
        $region31: #{painn_update.1} parent=11 // pred_region
          %s319 = ssub.s32 3072, 3072
          %320 = vsyncadd [#allocation13], %s319
          %s321 = sshll.u32 [#allocation12], 4
          %s322 = int_to_ptr.vmem [resolvable:$true] %s321
          %327 = dma.hbm_to_vmem [thread:$0]  %s6, 3072, %s322, [#allocation13], 192, 192, 12
        $region32: #{painn_update.1} parent=11 // pred_fallthru
          _
        // Predicated region
        $region33: #{painn_update.1} parent=11 // pred_check
          %p328 = pneg %p208
        $region34: #{painn_update.1} parent=11 // pred_check_branch
          %330 = sbr.rel (%p328) target = $region36
        $region35: #{painn_update.1} parent=11 // pred_region
          %s332 = ssub.s32 48, 48
          %333 = vsyncadd [#allocation13], %s332
          %s335 = sshll.u32 [#allocation14], 4
          %s336 = int_to_ptr.vmem [resolvable:$true] %s335
          %338 = dma.hbm_to_vmem [thread:$0]  %s7, 48, %s336, [#allocation13]
        $region36: #{painn_update.1} parent=11 // pred_fallthru
          _
      $region12: #{painn_update.1} parent=5 // pred_fallthru
        _
      %p339 = scmp.lt.s32.totalorder %s30, 3
      // Predicated region
      $region37: #{painn_update.1} parent=5 // pred_check
        %p340 = pneg %p339
      $region38: #{painn_update.1} parent=5 // pred_check_branch
        %342 = sbr.rel (%p340) target = $region40
      $region39: #{painn_update.1} parent=5 // pred_region
        // Predicated region
        $region41: #{painn_update.1} parent=39 // pred_check
          %p343 = pneg %p50
        $region42: #{painn_update.1} parent=39 // pred_check_branch
          %345 = sbr.rel (%p343) target = $region44
        $region43: #{painn_update.1} parent=39 // pred_region
          %s346 = sand.u32 %s40, 1
          %s347 = scalar_lea.sflag [#allocation4], %s346
          %s348 = sand.u32 %s40, 1
          %s349 = smul.addr %s348, 64
          %s350 = scalar_lea.vmem [#allocation3], %s349
          %s351 = smul.u32 16, %s30
          %s352 = ssub.s32 38, %s351
          %p353 = scmp.lt.s32.totalorder %s352, 16
          %s354 = scalar_select %p353, %s352, 16
          %s355 = smul.u32 64, %s354
          %s357 = ssub.s32 1024, %s355
          %358 = vsyncadd %s347, %s357
          %p359 = scmp.ne.s32.totalorder 0, %s355
          %s360 = smul.addr %s351, 64
          %s361 = scalar_lea.hbm %s0, %s360
          %s362 = smul.u32 4, %s354
          %s363 = sshll.u32 %s350, 4
          %s364 = int_to_ptr.vmem [resolvable:$true] %s363
          %s365 = sshll.u32 %s362, 4
          %369 = dma.hbm_to_vmem [thread:$0]  (%p359), %s361, %s365, %s364, %s347, 64, 64, 4
        $region44: #{painn_update.1} parent=39 // pred_fallthru
          _
        // Predicated region
        $region45: #{painn_update.1} parent=39 // pred_check
          %p370 = pneg %p76
        $region46: #{painn_update.1} parent=39 // pred_check_branch
          %372 = sbr.rel (%p370) target = $region48
        $region47: #{painn_update.1} parent=39 // pred_region
          #allocation19 [shape = 'u32[6]{0}', space=smem, size = 0x18, scoped, tag = 'DMA stride descriptor']
          %s373 = sand.u32 %s30, 1
          %s374 = scalar_lea.sflag [#allocation7], %s373
          %s375 = sand.u32 %s66, 1
          %s376 = smul.addr %s375, 192
          %s377 = scalar_lea.vmem [#allocation6], %s376
          %s378 = smul.u32 16, %s30
          %s379 = ssub.s32 38, %s378
          %p380 = scmp.lt.s32.totalorder %s379, 16
          %s381 = scalar_select %p380, %s379, 16
          %s382 = smul.u32 192, %s381
          %s384 = ssub.s32 3072, %s382
          %385 = vsyncadd %s374, %s384
          %p386 = scmp.ne.s32.totalorder 0, %s382
          %s387 = smul.addr %s378, 64
          %s388 = scalar_lea.hbm %s1, %s387
          %s389 = smul.u32 4, %s381
          %s390 = smul.u32 %s389, 3
          %s392 = sshll.u32 1, 14
          %s393 = sxor.u32 4294967295, %s392
          %s395 = sld [smem:[#allocation0]]
          %s396 = sadd.s32 2, %s395
          %s398 = sshll.u32 7, 26
          %s399 = sxor.u32 4294967295, %s398
          %s400 = sand.u32 0, %s399
          %s401 = sshll.u32 %s396, 26
          %s402 = sor.u32 %s400, %s401
          %s403 = sshll.u32 %s377, 4
          %s404 = int_to_ptr.vmem [resolvable:$true] %s403
          %s405 = sshll.u32 %s390, 4
          %410 = sst [smem:[#allocation19]] 2432
          %s411 = scalar_lea.smem [#allocation19], 1
          %412 = sst [smem:[%s411]] 1024
          %s413 = scalar_lea.smem [#allocation19], 2
          %414 = sst [smem:[%s413]] %s381
          %s415 = scalar_lea.smem [#allocation19], 3
          %416 = sst [smem:[%s415]] 64
          %s417 = scalar_lea.smem [#allocation19], 4
          %418 = sst [smem:[%s417]] 64
          %s419 = scalar_lea.smem [#allocation19], 5
          %420 = sst [smem:[%s419]] 4
          %422 = dma.general (%p386), %s388, %s405, %s404, %s374, 131072, [#allocation19], %s402, 0
        $region48: #{painn_update.1} parent=39 // pred_fallthru
          _
      $region40: #{painn_update.1} parent=5 // pred_fallthru
        _
      %p423 = scmp.le.s32.totalorder 1, %s30
      %p424 = scmp.lt.s32.totalorder %s30, 4
      %p425 = pnand %p423, %p424
      %p426 = pneg %p425
      // Predicated region
      $region49: #{painn_update.1} parent=5 // pred_check
        _
      $region50: #{painn_update.1} parent=5 // pred_check_branch
        %428 = sbr.rel (%p425) target = $region52
      $region51: #{painn_update.1} parent=5 // pred_region
        %s429 = ssub.s32 %s30, 1
        %s430 = sand.u32 %s43, 1
        %s431 = scalar_lea.sflag [#allocation4], %s430
        %s432 = sand.u32 %s43, 1
        %s433 = smul.addr %s432, 64
        %s434 = scalar_lea.vmem [#allocation3], %s433
        // Predicated region
        $region53: #{painn_update.1} parent=51 // pred_check
          %p435 = pneg %p56
        $region54: #{painn_update.1} parent=51 // pred_check_branch
          %437 = sbr.rel (%p435) target = $region56
        $region55: #{painn_update.1} parent=51 // pred_region
          %438 = dma.done %s431, 1024
        $region56: #{painn_update.1} parent=51 // pred_fallthru
          _
        %s439 = sand.u32 %s35, 1
        %s440 = scalar_lea.sflag [#allocation7], %s439
        %s441 = sand.u32 %s69, 1
        %s442 = smul.addr %s441, 192
        %s443 = scalar_lea.vmem [#allocation6], %s442
        // Predicated region
        $region57: #{painn_update.1} parent=51 // pred_check
          %p444 = pneg %p82
        $region58: #{painn_update.1} parent=51 // pred_check_branch
          %446 = sbr.rel (%p444) target = $region60
        $region59: #{painn_update.1} parent=51 // pred_region
          %447 = dma.done %s440, 3072
        $region60: #{painn_update.1} parent=51 // pred_fallthru
          _
        // Predicated region
        $region61: #{painn_update.1} parent=51 // pred_check
          %p448 = pneg %p103
        $region62: #{painn_update.1} parent=51 // pred_check_branch
          %450 = sbr.rel (%p448) target = $region64
        $region63: #{painn_update.1} parent=51 // pred_region
          %451 = dma.done [#allocation7], 2048
        $region64: #{painn_update.1} parent=51 // pred_fallthru
          _
        // Predicated region
        $region65: #{painn_update.1} parent=51 // pred_check
          %p452 = pneg %p145
        $region66: #{painn_update.1} parent=51 // pred_check_branch
          %454 = sbr.rel (%p452) target = $region68
        $region67: #{painn_update.1} parent=51 // pred_region
          %455 = dma.done [#allocation10], 2048
        $region68: #{painn_update.1} parent=51 // pred_fallthru
          _
        // Predicated region
        $region69: #{painn_update.1} parent=51 // pred_check
          %p456 = pneg %p166
        $region70: #{painn_update.1} parent=51 // pred_check_branch
          %458 = sbr.rel (%p456) target = $region72
        $region71: #{painn_update.1} parent=51 // pred_region
          %459 = dma.done [#allocation10], 16
        $region72: #{painn_update.1} parent=51 // pred_fallthru
          _
        // Predicated region
        $region73: #{painn_update.1} parent=51 // pred_check
          %p460 = pneg %p187
        $region74: #{painn_update.1} parent=51 // pred_check_branch
          %462 = sbr.rel (%p460) target = $region76
        $region75: #{painn_update.1} parent=51 // pred_region
          %463 = dma.done [#allocation13], 3072
        $region76: #{painn_update.1} parent=51 // pred_fallthru
          _
        // Predicated region
        $region77: #{painn_update.1} parent=51 // pred_check
          %p464 = pneg %p208
        $region78: #{painn_update.1} parent=51 // pred_check_branch
          %466 = sbr.rel (%p464) target = $region80
        $region79: #{painn_update.1} parent=51 // pred_region
          %467 = dma.done [#allocation13], 48
        $region80: #{painn_update.1} parent=51 // pred_fallthru
          _
        %s468 = sand.u32 %s43, 1
        %s469 = scalar_lea.sflag [#allocation4], %s468
        %s470 = sand.u32 %s43, 1
        %s471 = smul.addr %s470, 64
        %s472 = scalar_lea.vmem [#allocation3], %s471
        %p473 = pneg %p56
        %p474 = pneg %p53
        %s475 = sand.u32 %s35, 1
        %s476 = scalar_lea.sflag [#allocation7], %s475
        %s477 = sand.u32 %s69, 1
        %s478 = smul.addr %s477, 192
        %s479 = scalar_lea.vmem [#allocation6], %s478
        %p480 = pneg %p82
        %p481 = pneg %p79
        %p482 = pneg %p103
        %p483 = pneg %p100
        %p484 = pneg %p124
        %p485 = pneg %p121
        %p486 = pneg %p145
        %p487 = pneg %p142
        %p488 = pneg %p166
        %p489 = pneg %p163
        %p490 = pneg %p187
        %p491 = pneg %p184
        %p492 = pneg %p208
        %p493 = pneg %p205
        %p494 = pneg %p234
        %p495 = pneg %p231
        %s496 = sand.u32 %s221, 1
        %s497 = scalar_lea.sflag [#allocation5], %s496
        %s498 = sand.u32 %s221, 1
        %s499 = smul.addr %s498, 64
        %s500 = scalar_lea.vmem [#allocation15], %s499
        %p501 = pneg %p260
        %p502 = pneg %p257
        %s503 = sand.u32 %s247, 1
        %s504 = scalar_lea.sflag [#allocation17], %s503
        %s505 = sand.u32 %s247, 1
        %s506 = smul.addr %s505, 192
        %s507 = scalar_lea.vmem [#allocation16], %s506
        %s508 = smul.u32 16, %s35
        %s509 = ssub.s32 38, %s508
        %p510 = scmp.lt.s32.totalorder %s509, 16
        %s511 = scalar_select %p510, %s509, 16
        %s512 = smul.u32 64, %s511
        %s513 = smul.u32 16, %s35
        %s514 = ssub.s32 38, %s513
        %p515 = scmp.lt.s32.totalorder %s514, 16
        %s516 = scalar_select %p515, %s514, 16
        %s517 = smul.u32 192, %s516
        %s518 = smul.u32 16, %s35
        %s519 = ssub.s32 38, %s518
        %p520 = scmp.lt.s32.totalorder %s519, 16
        %s521 = scalar_select %p520, %s519, 16
        %s522 = smul.u32 64, %s521
        %s523 = smul.u32 16, %s35
        %s524 = ssub.s32 38, %s523
        %p525 = scmp.lt.s32.totalorder %s524, 16
        %s526 = scalar_select %p525, %s524, 16
        %s527 = smul.u32 192, %s526
        %v529 = vld [vmem:[%s434] sm:$0xf]
        %v530 = vld [vmem:[%s434 + $0x4] sm:$0xf]
        %v531 = vld [vmem:[%s434 + $0x8] sm:$0xf]
        %v532 = vld [vmem:[%s434 + $0xc] sm:$0xf]
        %v533 = vld [vmem:[%s434 + $0x10] sm:$0xf]
        %v534 = vld [vmem:[%s434 + $0x14] sm:$0xf]
        %v535 = vld [vmem:[%s434 + $0x18] sm:$0xf]
        %v536 = vld [vmem:[%s434 + $0x1c] sm:$0xf]
        %v537 = vld [vmem:[%s434 + $0x20] sm:$0xf]
        %v538 = vld [vmem:[%s434 + $0x24] sm:$0xf]
        %v539 = vld [vmem:[%s434 + $0x28] sm:$0xf]
        %v540 = vld [vmem:[%s434 + $0x2c] sm:$0xf]
        %v541 = vld [vmem:[%s434 + $0x30] sm:$0xf]
        %v542 = vld [vmem:[%s434 + $0x34] sm:$0xf]
        %v543 = vld [vmem:[%s434 + $0x38] sm:$0xf]
        %v544 = vld [vmem:[%s434 + $0x3c] sm:$0xf]
        %v545 = vld [vmem:[%s443] sm:$0xf]
        %v546 = vld [vmem:[%s443 + $0x4] sm:$0xf]
        %v547 = vld [vmem:[%s443 + $0x8] sm:$0xf]
        %v548 = vld [vmem:[%s443 + $0xc] sm:$0xf]
        %v549 = vld [vmem:[%s443 + $0x10] sm:$0xf]
        %v550 = vld [vmem:[%s443 + $0x14] sm:$0xf]
        %v551 = vld [vmem:[%s443 + $0x18] sm:$0xf]
        %v552 = vld [vmem:[%s443 + $0x1c] sm:$0xf]
        %v553 = vld [vmem:[%s443 + $0x20] sm:$0xf]
        %v554 = vld [vmem:[%s443 + $0x24] sm:$0xf]
        %v555 = vld [vmem:[%s443 + $0x28] sm:$0xf]
        %v556 = vld [vmem:[%s443 + $0x2c] sm:$0xf]
        %v557 = vld [vmem:[%s443 + $0x30] sm:$0xf]
        %v558 = vld [vmem:[%s443 + $0x34] sm:$0xf]
        %v559 = vld [vmem:[%s443 + $0x38] sm:$0xf]
        %v560 = vld [vmem:[%s443 + $0x3c] sm:$0xf]
        %v561 = vld [vmem:[%s443 + $0x40] sm:$0xf]
        %v562 = vld [vmem:[%s443 + $0x44] sm:$0xf]
        %v563 = vld [vmem:[%s443 + $0x48] sm:$0xf]
        %v564 = vld [vmem:[%s443 + $0x4c] sm:$0xf]
        %v565 = vld [vmem:[%s443 + $0x50] sm:$0xf]
        %v566 = vld [vmem:[%s443 + $0x54] sm:$0xf]
        %v567 = vld [vmem:[%s443 + $0x58] sm:$0xf]
        %v568 = vld [vmem:[%s443 + $0x5c] sm:$0xf]
        %v569 = vld [vmem:[%s443 + $0x60] sm:$0xf]
        %v570 = vld [vmem:[%s443 + $0x64] sm:$0xf]
        %v571 = vld [vmem:[%s443 + $0x68] sm:$0xf]
        %v572 = vld [vmem:[%s443 + $0x6c] sm:$0xf]
        %v573 = vld [vmem:[%s443 + $0x70] sm:$0xf]
        %v574 = vld [vmem:[%s443 + $0x74] sm:$0xf]
        %v575 = vld [vmem:[%s443 + $0x78] sm:$0xf]
        %v576 = vld [vmem:[%s443 + $0x7c] sm:$0xf]
        %v577 = vld [vmem:[%s443 + $0x80] sm:$0xf]
        %v578 = vld [vmem:[%s443 + $0x84] sm:$0xf]
        %v579 = vld [vmem:[%s443 + $0x88] sm:$0xf]
        %v580 = vld [vmem:[%s443 + $0x8c] sm:$0xf]
        %v581 = vld [vmem:[%s443 + $0x90] sm:$0xf]
        %v582 = vld [vmem:[%s443 + $0x94] sm:$0xf]
        %v583 = vld [vmem:[%s443 + $0x98] sm:$0xf]
        %v584 = vld [vmem:[%s443 + $0x9c] sm:$0xf]
        %v585 = vld [vmem:[%s443 + $0xa0] sm:$0xf]
        %v586 = vld [vmem:[%s443 + $0xa4] sm:$0xf]
        %v587 = vld [vmem:[%s443 + $0xa8] sm:$0xf]
        %v588 = vld [vmem:[%s443 + $0xac] sm:$0xf]
        %v589 = vld [vmem:[%s443 + $0xb0] sm:$0xf]
        %v590 = vld [vmem:[%s443 + $0xb4] sm:$0xf]
        %v591 = vld [vmem:[%s443 + $0xb8] sm:$0xf]
        %v592 = vld [vmem:[%s443 + $0xbc] sm:$0xf]
        %v593 = vld [vmem:[#allocation8] sm:$0xff]
        %v594 = vld [vmem:[#allocation8 + $0x8] sm:$0xff]
        %v595 = vld [vmem:[#allocation8 + $0x10] sm:$0xff]
        %v596 = vld [vmem:[#allocation8 + $0x18] sm:$0xff]
        %v597 = vld [vmem:[#allocation8 + $0x20] sm:$0xff]
        %v598 = vld [vmem:[#allocation8 + $0x28] sm:$0xff]
        %v599 = vld [vmem:[#allocation8 + $0x30] sm:$0xff]
        %v600 = vld [vmem:[#allocation8 + $0x38] sm:$0xff]
        %v601 = vld [vmem:[#allocation8 + $0x40] sm:$0xff]
        %v602 = vld [vmem:[#allocation8 + $0x48] sm:$0xff]
        %v603 = vld [vmem:[#allocation8 + $0x50] sm:$0xff]
        %v604 = vld [vmem:[#allocation8 + $0x58] sm:$0xff]
        %v605 = vld [vmem:[#allocation8 + $0x60] sm:$0xff]
        %v606 = vld [vmem:[#allocation8 + $0x68] sm:$0xff]
        %v607 = vld [vmem:[#allocation8 + $0x70] sm:$0xff]
        %v608 = vld [vmem:[#allocation8 + $0x78] sm:$0xff]
        %v609 = vld [vmem:[%s3] sm:$0x3]
        %v611 = vlaneseq
        %v612 = vshrl.u32 %v611, 7
        %v613 = vsub.s32 0, %v612
        %v614 = vrot.slane %v609, %v613
        %v615 = vlaneseq
        %v616 = vshrl.u32 %v615, 7
        %v617 = vsub.s32 1, %v616
        %v618 = vrot.slane %v609, %v617
        %v669 = vunpack.c.l.b16 %v545
        %v670 = vunpack.c.l.b16 %v546
        %v671 = vunpack.c.l.b16 %v547
        %v672 = vunpack.c.l.b16 %v548
        %v673 = vunpack.c.l.b16 %v549
        %v674 = vunpack.c.l.b16 %v550
        %v675 = vunpack.c.l.b16 %v551
        %v676 = vunpack.c.l.b16 %v552
        %v677 = vunpack.c.l.b16 %v553
        %v678 = vunpack.c.l.b16 %v554
        %v679 = vunpack.c.l.b16 %v555
        %v680 = vunpack.c.l.b16 %v556
        %v681 = vunpack.c.l.b16 %v557
        %v682 = vunpack.c.l.b16 %v558
        %v683 = vunpack.c.l.b16 %v559
        %v684 = vunpack.c.l.b16 %v560
        %v685 = vunpack.c.l.b16 %v561
        %v686 = vunpack.c.l.b16 %v562
        %v687 = vunpack.c.l.b16 %v563
        %v688 = vunpack.c.l.b16 %v564
        %v689 = vunpack.c.l.b16 %v565
        %v690 = vunpack.c.l.b16 %v566
        %v691 = vunpack.c.l.b16 %v567
        %v692 = vunpack.c.l.b16 %v568
        %v693 = vunpack.c.l.b16 %v569
        %v694 = vunpack.c.l.b16 %v570
        %v695 = vunpack.c.l.b16 %v571
        %v696 = vunpack.c.l.b16 %v572
        %v697 = vunpack.c.l.b16 %v573
        %v698 = vunpack.c.l.b16 %v574
        %v699 = vunpack.c.l.b16 %v575
        %v700 = vunpack.c.l.b16 %v576
        %v701 = vunpack.c.l.b16 %v577
        %v702 = vunpack.c.l.b16 %v578
        %v703 = vunpack.c.l.b16 %v579
        %v704 = vunpack.c.l.b16 %v580
        %v705 = vunpack.c.l.b16 %v581
        %v706 = vunpack.c.l.b16 %v582
        %v707 = vunpack.c.l.b16 %v583
        %v708 = vunpack.c.l.b16 %v584
        %v709 = vunpack.c.l.b16 %v585
        %v710 = vunpack.c.l.b16 %v586
        %v711 = vunpack.c.l.b16 %v587
        %v712 = vunpack.c.l.b16 %v588
        %v713 = vunpack.c.l.b16 %v589
        %v714 = vunpack.c.l.b16 %v590
        %v715 = vunpack.c.l.b16 %v591
        %v716 = vunpack.c.l.b16 %v592
        %v717 = vpack.c.b16 %v670, %v669
        %v718 = vpack.c.b16 %v672, %v671
        %v719 = vpack.c.b16 %v674, %v673
        %v720 = vpack.c.b16 %v676, %v675
        %v721 = vpack.c.b16 %v678, %v677
        %v722 = vpack.c.b16 %v680, %v679
        %v723 = vpack.c.b16 %v682, %v681
        %v724 = vpack.c.b16 %v684, %v683
        %v725 = vpack.c.b16 %v686, %v685
        %v726 = vpack.c.b16 %v688, %v687
        %v727 = vpack.c.b16 %v690, %v689
        %v728 = vpack.c.b16 %v692, %v691
        %v729 = vpack.c.b16 %v694, %v693
        %v730 = vpack.c.b16 %v696, %v695
        %v731 = vpack.c.b16 %v698, %v697
        %v732 = vpack.c.b16 %v700, %v699
        %v733 = vpack.c.b16 %v702, %v701
        %v734 = vpack.c.b16 %v704, %v703
        %v735 = vpack.c.b16 %v706, %v705
        %v736 = vpack.c.b16 %v708, %v707
        %v737 = vpack.c.b16 %v710, %v709
        %v738 = vpack.c.b16 %v712, %v711
        %v739 = vpack.c.b16 %v714, %v713
        %v740 = vpack.c.b16 %v716, %v715
        %v781 = vunpack.c.l.b16 %v593
        %v782 = vunpack.c.h.b16 %v593
        %v783 = vunpack.c.l.b16 %v594
        %v784 = vunpack.c.h.b16 %v594
        %v785 = vunpack.c.l.b16 %v595
        %v786 = vunpack.c.h.b16 %v595
        %v787 = vunpack.c.l.b16 %v596
        %v788 = vunpack.c.h.b16 %v596
        %v789 = vunpack.c.l.b16 %v597
        %v790 = vunpack.c.h.b16 %v597
        %v791 = vunpack.c.l.b16 %v598
        %v792 = vunpack.c.h.b16 %v598
        %v793 = vunpack.c.l.b16 %v599
        %v794 = vunpack.c.h.b16 %v599
        %v795 = vunpack.c.l.b16 %v600
        %v796 = vunpack.c.h.b16 %v600
        %v797 = vunpack.c.l.b16 %v601
        %v798 = vunpack.c.h.b16 %v601
        %v799 = vunpack.c.l.b16 %v602
        %v800 = vunpack.c.h.b16 %v602
        %v801 = vunpack.c.l.b16 %v603
        %v802 = vunpack.c.h.b16 %v603
        %v803 = vunpack.c.l.b16 %v604
        %v804 = vunpack.c.h.b16 %v604
        %v805 = vunpack.c.l.b16 %v605
        %v806 = vunpack.c.h.b16 %v605
        %v807 = vunpack.c.l.b16 %v606
        %v808 = vunpack.c.h.b16 %v606
        %v809 = vunpack.c.l.b16 %v607
        %v810 = vunpack.c.h.b16 %v607
        %v811 = vunpack.c.l.b16 %v608
        %v812 = vunpack.c.h.b16 %v608
        %v813 = vpack.c.b16 %v783, %v781
        %v814 = vpack.c.b16 %v784, %v782
        %v815 = vpack.c.b16 %v787, %v785
        %v816 = vpack.c.b16 %v788, %v786
        %v817 = vpack.c.b16 %v791, %v789
        %v818 = vpack.c.b16 %v792, %v790
        %v819 = vpack.c.b16 %v795, %v793
        %v820 = vpack.c.b16 %v796, %v794
        %v821 = vpack.c.b16 %v799, %v797
        %v822 = vpack.c.b16 %v800, %v798
        %v823 = vpack.c.b16 %v803, %v801
        %v824 = vpack.c.b16 %v804, %v802
        %v825 = vpack.c.b16 %v807, %v805
        %v826 = vpack.c.b16 %v808, %v806
        %v827 = vpack.c.b16 %v811, %v809
        %v828 = vpack.c.b16 %v812, %v810
        %845 = vmatprep.subr.bf16.mxu0 %v828
        %846 = vmatpush1.bf16.msra.mxu0 %v827
        %847 = vmatprep.subr.bf16.mxu0 %v826
        %848 = vmatpush1.bf16.msra.mxu0 %v825
        %849 = vmatprep.subr.bf16.mxu0 %v824
        %850 = vmatpush1.bf16.msra.mxu0 %v823
        %851 = vmatprep.subr.bf16.mxu0 %v822
        %852 = vmatpush1.bf16.msra.mxu0 %v821
        %853 = vmatprep.subr.bf16.mxu0 %v820
        %854 = vmatpush1.bf16.msra.mxu0 %v819
        %855 = vmatprep.subr.bf16.mxu0 %v818
        %856 = vmatpush1.bf16.msra.mxu0 %v817
        %857 = vmatprep.subr.bf16.mxu0 %v816
        %858 = vmatpush1.bf16.msra.mxu0 %v815
        %859 = vmatprep.subr.bf16.mxu0 %v814
        %860 = vmatpush1.bf16.msra.mxu0 %v813
        %861 = vmatprep.subr.bf16.mxu0 0
        %862 = vmatpush2.bf16.msra.mxu0 0
        %863 = vmatprep.subr.bf16.mxu0 0
        %864 = vmatpush2.bf16.msra.mxu0 0
        %865 = vmatprep.subr.bf16.mxu0 0
        %866 = vmatpush2.bf16.msra.mxu0 0
        %867 = vmatprep.subr.bf16.mxu0 0
        %868 = vmatpush2.bf16.msra.mxu0 0
        %869 = vmatprep.subr.bf16.mxu0 0
        %870 = vmatpush2.bf16.msra.mxu0 0
        %871 = vmatprep.subr.bf16.mxu0 0
        %872 = vmatpush2.bf16.msra.mxu0 0
        %873 = vmatprep.subr.bf16.mxu0 0
        %874 = vmatpush2.bf16.msra.mxu0 0
        %875 = vmatprep.subr.bf16.mxu0 0
        %876 = vmatpush2.bf16.msra.mxu0 0
        %877 = vmatprep.mubr.bf16.mxu0 0
        %878 = vmatmul.mubr.bf16.gmra.mxu0 %v717
        %v879 = vpop.f32.mrf.mxu0
        %v880 = vadd.f32 %v614, %v879
        %v881 = vpop.f32.mrf.mxu0
        %v882 = vadd.f32 %v618, %v881
        %v883 = vpop.f32.mrf.mxu0
        %v884 = vadd.f32 %v614, %v883
        %v885 = vpop.f32.mrf.mxu0
        %v886 = vadd.f32 %v618, %v885
        %887 = vmatprep.mubr.bf16.mxu0 0
        %888 = vmatmul.mubr.bf16.gmra.mxu0 %v718
        %v889 = vpop.f32.mrf.mxu0
        %v890 = vadd.f32 %v614, %v889
        %v891 = vpop.f32.mrf.mxu0
        %v892 = vadd.f32 %v618, %v891
        %v893 = vpop.f32.mrf.mxu0
        %v894 = vadd.f32 %v614, %v893
        %v895 = vpop.f32.mrf.mxu0
        %v896 = vadd.f32 %v618, %v895
        %897 = vmatprep.mubr.bf16.mxu0 0
        %898 = vmatmul.mubr.bf16.gmra.mxu0 %v719
        %v899 = vpop.f32.mrf.mxu0
        %v900 = vadd.f32 %v614, %v899
        %v901 = vpop.f32.mrf.mxu0
        %v902 = vadd.f32 %v618, %v901
        %v903 = vpop.f32.mrf.mxu0
        %v904 = vadd.f32 %v614, %v903
        %v905 = vpop.f32.mrf.mxu0
        %v906 = vadd.f32 %v618, %v905
        %907 = vmatprep.mubr.bf16.mxu0 0
        %908 = vmatmul.mubr.bf16.gmra.mxu0 %v720
        %v909 = vpop.f32.mrf.mxu0
        %v910 = vadd.f32 %v614, %v909
        %v911 = vpop.f32.mrf.mxu0
        %v912 = vadd.f32 %v618, %v911
        %v913 = vpop.f32.mrf.mxu0
        %v914 = vadd.f32 %v614, %v913
        %v915 = vpop.f32.mrf.mxu0
        %v916 = vadd.f32 %v618, %v915
        %917 = vmatprep.mubr.bf16.mxu0 0
        %918 = vmatmul.mubr.bf16.gmra.mxu0 %v721
        %v919 = vpop.f32.mrf.mxu0
        %v920 = vadd.f32 %v614, %v919
        %v921 = vpop.f32.mrf.mxu0
        %v922 = vadd.f32 %v618, %v921
        %v923 = vpop.f32.mrf.mxu0
        %v924 = vadd.f32 %v614, %v923
        %v925 = vpop.f32.mrf.mxu0
        %v926 = vadd.f32 %v618, %v925
        %927 = vmatprep.mubr.bf16.mxu0 0
        %928 = vmatmul.mubr.bf16.gmra.mxu0 %v722
        %v929 = vpop.f32.mrf.mxu0
        %v930 = vadd.f32 %v614, %v929
        %v931 = vpop.f32.mrf.mxu0
        %v932 = vadd.f32 %v618, %v931
        %v933 = vpop.f32.mrf.mxu0
        %v934 = vadd.f32 %v614, %v933
        %v935 = vpop.f32.mrf.mxu0
        %v936 = vadd.f32 %v618, %v935
        %937 = vmatprep.mubr.bf16.mxu0 0
        %938 = vmatmul.mubr.bf16.gmra.mxu0 %v723
        %v939 = vpop.f32.mrf.mxu0
        %v940 = vadd.f32 %v614, %v939
        %v941 = vpop.f32.mrf.mxu0
        %v942 = vadd.f32 %v618, %v941
        %v943 = vpop.f32.mrf.mxu0
        %v944 = vadd.f32 %v614, %v943
        %v945 = vpop.f32.mrf.mxu0
        %v946 = vadd.f32 %v618, %v945
        %947 = vmatprep.mubr.bf16.mxu0 0
        %948 = vmatmul.mubr.bf16.gmra.mxu0 %v724
        %v949 = vpop.f32.mrf.mxu0
        %v950 = vadd.f32 %v614, %v949
        %v951 = vpop.f32.mrf.mxu0
        %v952 = vadd.f32 %v618, %v951
        %v953 = vpop.f32.mrf.mxu0
        %v954 = vadd.f32 %v614, %v953
        %v955 = vpop.f32.mrf.mxu0
        %v956 = vadd.f32 %v618, %v955
        %957 = vmatprep.mubr.bf16.mxu0 0
        %958 = vmatmul.mubr.bf16.gmra.mxu0 %v725
        %v959 = vpop.f32.mrf.mxu0
        %v960 = vadd.f32 %v614, %v959
        %v961 = vpop.f32.mrf.mxu0
        %v962 = vadd.f32 %v618, %v961
        %v963 = vpop.f32.mrf.mxu0
        %v964 = vadd.f32 %v614, %v963
        %v965 = vpop.f32.mrf.mxu0
        %v966 = vadd.f32 %v618, %v965
        %967 = vmatprep.mubr.bf16.mxu0 0
        %968 = vmatmul.mubr.bf16.gmra.mxu0 %v726
        %v969 = vpop.f32.mrf.mxu0
        %v970 = vadd.f32 %v614, %v969
        %v971 = vpop.f32.mrf.mxu0
        %v972 = vadd.f32 %v618, %v971
        %v973 = vpop.f32.mrf.mxu0
        %v974 = vadd.f32 %v614, %v973
        %v975 = vpop.f32.mrf.mxu0
        %v976 = vadd.f32 %v618, %v975
        %977 = vmatprep.mubr.bf16.mxu0 0
        %978 = vmatmul.mubr.bf16.gmra.mxu0 %v727
        %v979 = vpop.f32.mrf.mxu0
        %v980 = vadd.f32 %v614, %v979
        %v981 = vpop.f32.mrf.mxu0
        %v982 = vadd.f32 %v618, %v981
        %v983 = vpop.f32.mrf.mxu0
        %v984 = vadd.f32 %v614, %v983
        %v985 = vpop.f32.mrf.mxu0
        %v986 = vadd.f32 %v618, %v985
        %987 = vmatprep.mubr.bf16.mxu0 0
        %988 = vmatmul.mubr.bf16.gmra.mxu0 %v728
        %v989 = vpop.f32.mrf.mxu0
        %v990 = vadd.f32 %v614, %v989
        %v991 = vpop.f32.mrf.mxu0
        %v992 = vadd.f32 %v618, %v991
        %v993 = vpop.f32.mrf.mxu0
        %v994 = vadd.f32 %v614, %v993
        %v995 = vpop.f32.mrf.mxu0
        %v996 = vadd.f32 %v618, %v995
        %997 = vmatprep.mubr.bf16.mxu0 0
        %998 = vmatmul.mubr.bf16.gmra.mxu0 %v729
        %v999 = vpop.f32.mrf.mxu0
        %v1000 = vadd.f32 %v614, %v999
        %v1001 = vpop.f32.mrf.mxu0
        %v1002 = vadd.f32 %v618, %v1001
        %v1003 = vpop.f32.mrf.mxu0
        %v1004 = vadd.f32 %v614, %v1003
        %v1005 = vpop.f32.mrf.mxu0
        %v1006 = vadd.f32 %v618, %v1005
        %1007 = vmatprep.mubr.bf16.mxu0 0
        %1008 = vmatmul.mubr.bf16.gmra.mxu0 %v730
        %v1009 = vpop.f32.mrf.mxu0
        %v1010 = vadd.f32 %v614, %v1009
        %v1011 = vpop.f32.mrf.mxu0
        %v1012 = vadd.f32 %v618, %v1011
        %v1013 = vpop.f32.mrf.mxu0
        %v1014 = vadd.f32 %v614, %v1013
        %v1015 = vpop.f32.mrf.mxu0
        %v1016 = vadd.f32 %v618, %v1015
        %1017 = vmatprep.mubr.bf16.mxu0 0
        %1018 = vmatmul.mubr.bf16.gmra.mxu0 %v731
        %v1019 = vpop.f32.mrf.mxu0
        %v1020 = vadd.f32 %v614, %v1019
        %v1021 = vpop.f32.mrf.mxu0
        %v1022 = vadd.f32 %v618, %v1021
        %v1023 = vpop.f32.mrf.mxu0
        %v1024 = vadd.f32 %v614, %v1023
        %v1025 = vpop.f32.mrf.mxu0
        %v1026 = vadd.f32 %v618, %v1025
        %1027 = vmatprep.mubr.bf16.mxu0 0
        %1028 = vmatmul.mubr.bf16.gmra.mxu0 %v732
        %v1029 = vpop.f32.mrf.mxu0
        %v1030 = vadd.f32 %v614, %v1029
        %v1031 = vpop.f32.mrf.mxu0
        %v1032 = vadd.f32 %v618, %v1031
        %v1033 = vpop.f32.mrf.mxu0
        %v1034 = vadd.f32 %v614, %v1033
        %v1035 = vpop.f32.mrf.mxu0
        %v1036 = vadd.f32 %v618, %v1035
        %1037 = vmatprep.mubr.bf16.mxu0 0
        %1038 = vmatmul.mubr.bf16.gmra.mxu0 %v733
        %v1039 = vpop.f32.mrf.mxu0
        %v1040 = vadd.f32 %v614, %v1039
        %v1041 = vpop.f32.mrf.mxu0
        %v1042 = vadd.f32 %v618, %v1041
        %v1043 = vpop.f32.mrf.mxu0
        %v1044 = vadd.f32 %v614, %v1043
        %v1045 = vpop.f32.mrf.mxu0
        %v1046 = vadd.f32 %v618, %v1045
        %1047 = vmatprep.mubr.bf16.mxu0 0
        %1048 = vmatmul.mubr.bf16.gmra.mxu0 %v734
        %v1049 = vpop.f32.mrf.mxu0
        %v1050 = vadd.f32 %v614, %v1049
        %v1051 = vpop.f32.mrf.mxu0
        %v1052 = vadd.f32 %v618, %v1051
        %v1053 = vpop.f32.mrf.mxu0
        %v1054 = vadd.f32 %v614, %v1053
        %v1055 = vpop.f32.mrf.mxu0
        %v1056 = vadd.f32 %v618, %v1055
        %1057 = vmatprep.mubr.bf16.mxu0 0
        %1058 = vmatmul.mubr.bf16.gmra.mxu0 %v735
        %v1059 = vpop.f32.mrf.mxu0
        %v1060 = vadd.f32 %v614, %v1059
        %v1061 = vpop.f32.mrf.mxu0
        %v1062 = vadd.f32 %v618, %v1061
        %v1063 = vpop.f32.mrf.mxu0
        %v1064 = vadd.f32 %v614, %v1063
        %v1065 = vpop.f32.mrf.mxu0
        %v1066 = vadd.f32 %v618, %v1065
        %1067 = vmatprep.mubr.bf16.mxu0 0
        %1068 = vmatmul.mubr.bf16.gmra.mxu0 %v736
        %v1069 = vpop.f32.mrf.mxu0
        %v1070 = vadd.f32 %v614, %v1069
        %v1071 = vpop.f32.mrf.mxu0
        %v1072 = vadd.f32 %v618, %v1071
        %v1073 = vpop.f32.mrf.mxu0
        %v1074 = vadd.f32 %v614, %v1073
        %v1075 = vpop.f32.mrf.mxu0
        %v1076 = vadd.f32 %v618, %v1075
        %1077 = vmatprep.mubr.bf16.mxu0 0
        %1078 = vmatmul.mubr.bf16.gmra.mxu0 %v737
        %v1079 = vpop.f32.mrf.mxu0
        %v1080 = vadd.f32 %v614, %v1079
        %v1081 = vpop.f32.mrf.mxu0
        %v1082 = vadd.f32 %v618, %v1081
        %v1083 = vpop.f32.mrf.mxu0
        %v1084 = vadd.f32 %v614, %v1083
        %v1085 = vpop.f32.mrf.mxu0
        %v1086 = vadd.f32 %v618, %v1085
        %1087 = vmatprep.mubr.bf16.mxu0 0
        %1088 = vmatmul.mubr.bf16.gmra.mxu0 %v738
        %v1089 = vpop.f32.mrf.mxu0
        %v1090 = vadd.f32 %v614, %v1089
        %v1091 = vpop.f32.mrf.mxu0
        %v1092 = vadd.f32 %v618, %v1091
        %v1093 = vpop.f32.mrf.mxu0
        %v1094 = vadd.f32 %v614, %v1093
        %v1095 = vpop.f32.mrf.mxu0
        %v1096 = vadd.f32 %v618, %v1095
        %1097 = vmatprep.mubr.bf16.mxu0 0
        %1098 = vmatmul.mubr.bf16.gmra.mxu0 %v739
        %v1099 = vpop.f32.mrf.mxu0
        %v1100 = vadd.f32 %v614, %v1099
        %v1101 = vpop.f32.mrf.mxu0
        %v1102 = vadd.f32 %v618, %v1101
        %v1103 = vpop.f32.mrf.mxu0
        %v1104 = vadd.f32 %v614, %v1103
        %v1105 = vpop.f32.mrf.mxu0
        %v1106 = vadd.f32 %v618, %v1105
        %1107 = vmatprep.mubr.bf16.mxu0 0
        %1108 = vmatmul.mubr.bf16.gmra.mxu0 %v740
        %v1109 = vpop.f32.mrf.mxu0
        %v1110 = vadd.f32 %v614, %v1109
        %v1111 = vpop.f32.mrf.mxu0
        %v1112 = vadd.f32 %v618, %v1111
        %v1113 = vpop.f32.mrf.mxu0
        %v1114 = vadd.f32 %v614, %v1113
        %v1115 = vpop.f32.mrf.mxu0
        %v1116 = vadd.f32 %v618, %v1115
        %1117 = vdwg.mxu0
        %v1118 = vmul.f32 %v882, %v882
        %v1119 = vmul.f32 %v886, %v886
        %v1120 = vmul.f32 %v892, %v892
        %v1121 = vmul.f32 %v896, %v896
        %v1122 = vmul.f32 %v902, %v902
        %v1123 = vmul.f32 %v906, %v906
        %v1124 = vmul.f32 %v912, %v912
        %v1125 = vmul.f32 %v916, %v916
        %v1126 = vmul.f32 %v922, %v922
        %v1127 = vmul.f32 %v926, %v926
        %v1128 = vmul.f32 %v932, %v932
        %v1129 = vmul.f32 %v936, %v936
        %v1130 = vmul.f32 %v942, %v942
        %v1131 = vmul.f32 %v946, %v946
        %v1132 = vmul.f32 %v952, %v952
        %v1133 = vmul.f32 %v956, %v956
        %v1134 = vmul.f32 %v962, %v962
        %v1135 = vmul.f32 %v966, %v966
        %v1136 = vmul.f32 %v972, %v972
        %v1137 = vmul.f32 %v976, %v976
        %v1138 = vmul.f32 %v982, %v982
        %v1139 = vmul.f32 %v986, %v986
        %v1140 = vmul.f32 %v992, %v992
        %v1141 = vmul.f32 %v996, %v996
        %v1142 = vmul.f32 %v1002, %v1002
        %v1143 = vmul.f32 %v1006, %v1006
        %v1144 = vmul.f32 %v1012, %v1012
        %v1145 = vmul.f32 %v1016, %v1016
        %v1146 = vmul.f32 %v1022, %v1022
        %v1147 = vmul.f32 %v1026, %v1026
        %v1148 = vmul.f32 %v1032, %v1032
        %v1149 = vmul.f32 %v1036, %v1036
        %v1150 = vmul.f32 %v1042, %v1042
        %v1151 = vmul.f32 %v1046, %v1046
        %v1152 = vmul.f32 %v1052, %v1052
        %v1153 = vmul.f32 %v1056, %v1056
        %v1154 = vmul.f32 %v1062, %v1062
        %v1155 = vmul.f32 %v1066, %v1066
        %v1156 = vmul.f32 %v1072, %v1072
        %v1157 = vmul.f32 %v1076, %v1076
        %v1158 = vmul.f32 %v1082, %v1082
        %v1159 = vmul.f32 %v1086, %v1086
        %v1160 = vmul.f32 %v1092, %v1092
        %v1161 = vmul.f32 %v1096, %v1096
        %v1162 = vmul.f32 %v1102, %v1102
        %v1163 = vmul.f32 %v1106, %v1106
        %v1164 = vmul.f32 %v1112, %v1112
        %v1165 = vmul.f32 %v1116, %v1116
        %v1166 = vadd.f32 %v1118, %v1134
        %v1167 = vadd.f32 %v1166, %v1150
        %v1168 = vadd.f32 %v1119, %v1135
        %v1169 = vadd.f32 %v1168, %v1151
        %v1170 = vadd.f32 %v1120, %v1136
        %v1171 = vadd.f32 %v1170, %v1152
        %v1172 = vadd.f32 %v1121, %v1137
        %v1173 = vadd.f32 %v1172, %v1153
        %v1174 = vadd.f32 %v1122, %v1138
        %v1175 = vadd.f32 %v1174, %v1154
        %v1176 = vadd.f32 %v1123, %v1139
        %v1177 = vadd.f32 %v1176, %v1155
        %v1178 = vadd.f32 %v1124, %v1140
        %v1179 = vadd.f32 %v1178, %v1156
        %v1180 = vadd.f32 %v1125, %v1141
        %v1181 = vadd.f32 %v1180, %v1157
        %v1182 = vadd.f32 %v1126, %v1142
        %v1183 = vadd.f32 %v1182, %v1158
        %v1184 = vadd.f32 %v1127, %v1143
        %v1185 = vadd.f32 %v1184, %v1159
        %v1186 = vadd.f32 %v1128, %v1144
        %v1187 = vadd.f32 %v1186, %v1160
        %v1188 = vadd.f32 %v1129, %v1145
        %v1189 = vadd.f32 %v1188, %v1161
        %v1190 = vadd.f32 %v1130, %v1146
        %v1191 = vadd.f32 %v1190, %v1162
        %v1192 = vadd.f32 %v1131, %v1147
        %v1193 = vadd.f32 %v1192, %v1163
        %v1194 = vadd.f32 %v1132, %v1148
        %v1195 = vadd.f32 %v1194, %v1164
        %v1196 = vadd.f32 %v1133, %v1149
        %v1197 = vadd.f32 %v1196, %v1165
        %v1198 = vrsqrt.pop %v1167
        %v1199 = vmul.f32 %v1167, %v1198
        %vm1200 = vcmp.eq.f32.partialorder %v1167, inf
        %v1201 = vsel %vm1200, %v1167, %v1199
        %vm1202 = vcmp.eq.f32.partialorder %v1167, 0.0
        %v1203 = vand.u32 %v1167, 2147483648
        %v1204 = vsel %vm1202, %v1203, %v1201
        %v1205 = vrsqrt.pop %v1169
        %v1206 = vmul.f32 %v1169, %v1205
        %vm1207 = vcmp.eq.f32.partialorder %v1169, inf
        %v1208 = vsel %vm1207, %v1169, %v1206
        %vm1209 = vcmp.eq.f32.partialorder %v1169, 0.0
        %v1210 = vand.u32 %v1169, 2147483648
        %v1211 = vsel %vm1209, %v1210, %v1208
        %v1212 = vrsqrt.pop %v1171
        %v1213 = vmul.f32 %v1171, %v1212
        %vm1214 = vcmp.eq.f32.partialorder %v1171, inf
        %v1215 = vsel %vm1214, %v1171, %v1213
        %vm1216 = vcmp.eq.f32.partialorder %v1171, 0.0
        %v1217 = vand.u32 %v1171, 2147483648
        %v1218 = vsel %vm1216, %v1217, %v1215
        %v1219 = vrsqrt.pop %v1173
        %v1220 = vmul.f32 %v1173, %v1219
        %vm1221 = vcmp.eq.f32.partialorder %v1173, inf
        %v1222 = vsel %vm1221, %v1173, %v1220
        %vm1223 = vcmp.eq.f32.partialorder %v1173, 0.0
        %v1224 = vand.u32 %v1173, 2147483648
        %v1225 = vsel %vm1223, %v1224, %v1222
        %v1226 = vrsqrt.pop %v1175
        %v1227 = vmul.f32 %v1175, %v1226
        %vm1228 = vcmp.eq.f32.partialorder %v1175, inf
        %v1229 = vsel %vm1228, %v1175, %v1227
        %vm1230 = vcmp.eq.f32.partialorder %v1175, 0.0
        %v1231 = vand.u32 %v1175, 2147483648
        %v1232 = vsel %vm1230, %v1231, %v1229
        %v1233 = vrsqrt.pop %v1177
        %v1234 = vmul.f32 %v1177, %v1233
        %vm1235 = vcmp.eq.f32.partialorder %v1177, inf
        %v1236 = vsel %vm1235, %v1177, %v1234
        %vm1237 = vcmp.eq.f32.partialorder %v1177, 0.0
        %v1238 = vand.u32 %v1177, 2147483648
        %v1239 = vsel %vm1237, %v1238, %v1236
        %v1240 = vrsqrt.pop %v1179
        %v1241 = vmul.f32 %v1179, %v1240
        %vm1242 = vcmp.eq.f32.partialorder %v1179, inf
        %v1243 = vsel %vm1242, %v1179, %v1241
        %vm1244 = vcmp.eq.f32.partialorder %v1179, 0.0
        %v1245 = vand.u32 %v1179, 2147483648
        %v1246 = vsel %vm1244, %v1245, %v1243
        %v1247 = vrsqrt.pop %v1181
        %v1248 = vmul.f32 %v1181, %v1247
        %vm1249 = vcmp.eq.f32.partialorder %v1181, inf
        %v1250 = vsel %vm1249, %v1181, %v1248
        %vm1251 = vcmp.eq.f32.partialorder %v1181, 0.0
        %v1252 = vand.u32 %v1181, 2147483648
        %v1253 = vsel %vm1251, %v1252, %v1250
        %v1254 = vrsqrt.pop %v1183
        %v1255 = vmul.f32 %v1183, %v1254
        %vm1256 = vcmp.eq.f32.partialorder %v1183, inf
        %v1257 = vsel %vm1256, %v1183, %v1255
        %vm1258 = vcmp.eq.f32.partialorder %v1183, 0.0
        %v1259 = vand.u32 %v1183, 2147483648
        %v1260 = vsel %vm1258, %v1259, %v1257
        %v1261 = vrsqrt.pop %v1185
        %v1262 = vmul.f32 %v1185, %v1261
        %vm1263 = vcmp.eq.f32.partialorder %v1185, inf
        %v1264 = vsel %vm1263, %v1185, %v1262
        %vm1265 = vcmp.eq.f32.partialorder %v1185, 0.0
        %v1266 = vand.u32 %v1185, 2147483648
        %v1267 = vsel %vm1265, %v1266, %v1264
        %v1268 = vrsqrt.pop %v1187
        %v1269 = vmul.f32 %v1187, %v1268
        %vm1270 = vcmp.eq.f32.partialorder %v1187, inf
        %v1271 = vsel %vm1270, %v1187, %v1269
        %vm1272 = vcmp.eq.f32.partialorder %v1187, 0.0
        %v1273 = vand.u32 %v1187, 2147483648
        %v1274 = vsel %vm1272, %v1273, %v1271
        %v1275 = vrsqrt.pop %v1189
        %v1276 = vmul.f32 %v1189, %v1275
        %vm1277 = vcmp.eq.f32.partialorder %v1189, inf
        %v1278 = vsel %vm1277, %v1189, %v1276
        %vm1279 = vcmp.eq.f32.partialorder %v1189, 0.0
        %v1280 = vand.u32 %v1189, 2147483648
        %v1281 = vsel %vm1279, %v1280, %v1278
        %v1282 = vrsqrt.pop %v1191
        %v1283 = vmul.f32 %v1191, %v1282
        %vm1284 = vcmp.eq.f32.partialorder %v1191, inf
        %v1285 = vsel %vm1284, %v1191, %v1283
        %vm1286 = vcmp.eq.f32.partialorder %v1191, 0.0
        %v1287 = vand.u32 %v1191, 2147483648
        %v1288 = vsel %vm1286, %v1287, %v1285
        %v1289 = vrsqrt.pop %v1193
        %v1290 = vmul.f32 %v1193, %v1289
        %vm1291 = vcmp.eq.f32.partialorder %v1193, inf
        %v1292 = vsel %vm1291, %v1193, %v1290
        %vm1293 = vcmp.eq.f32.partialorder %v1193, 0.0
        %v1294 = vand.u32 %v1193, 2147483648
        %v1295 = vsel %vm1293, %v1294, %v1292
        %v1296 = vrsqrt.pop %v1195
        %v1297 = vmul.f32 %v1195, %v1296
        %vm1298 = vcmp.eq.f32.partialorder %v1195, inf
        %v1299 = vsel %vm1298, %v1195, %v1297
        %vm1300 = vcmp.eq.f32.partialorder %v1195, 0.0
        %v1301 = vand.u32 %v1195, 2147483648
        %v1302 = vsel %vm1300, %v1301, %v1299
        %v1303 = vrsqrt.pop %v1197
        %v1304 = vmul.f32 %v1197, %v1303
        %vm1305 = vcmp.eq.f32.partialorder %v1197, inf
        %v1306 = vsel %vm1305, %v1197, %v1304
        %vm1307 = vcmp.eq.f32.partialorder %v1197, 0.0
        %v1308 = vand.u32 %v1197, 2147483648
        %v1309 = vsel %vm1307, %v1308, %v1306
        %v1310 = vmul.f32 %v880, %v882
        %v1311 = vmul.f32 %v884, %v886
        %v1312 = vmul.f32 %v890, %v892
        %v1313 = vmul.f32 %v894, %v896
        %v1314 = vmul.f32 %v900, %v902
        %v1315 = vmul.f32 %v904, %v906
        %v1316 = vmul.f32 %v910, %v912
        %v1317 = vmul.f32 %v914, %v916
        %v1318 = vmul.f32 %v920, %v922
        %v1319 = vmul.f32 %v924, %v926
        %v1320 = vmul.f32 %v930, %v932
        %v1321 = vmul.f32 %v934, %v936
        %v1322 = vmul.f32 %v940, %v942
        %v1323 = vmul.f32 %v944, %v946
        %v1324 = vmul.f32 %v950, %v952
        %v1325 = vmul.f32 %v954, %v956
        %v1326 = vmul.f32 %v960, %v962
        %v1327 = vmul.f32 %v964, %v966
        %v1328 = vmul.f32 %v970, %v972
        %v1329 = vmul.f32 %v974, %v976
        %v1330 = vmul.f32 %v980, %v982
        %v1331 = vmul.f32 %v984, %v986
        %v1332 = vmul.f32 %v990, %v992
        %v1333 = vmul.f32 %v994, %v996
        %v1334 = vmul.f32 %v1000, %v1002
        %v1335 = vmul.f32 %v1004, %v1006
        %v1336 = vmul.f32 %v1010, %v1012
        %v1337 = vmul.f32 %v1014, %v1016
        %v1338 = vmul.f32 %v1020, %v1022
        %v1339 = vmul.f32 %v1024, %v1026
        %v1340 = vmul.f32 %v1030, %v1032
        %v1341 = vmul.f32 %v1034, %v1036
        %v1342 = vmul.f32 %v1040, %v1042
        %v1343 = vmul.f32 %v1044, %v1046
        %v1344 = vmul.f32 %v1050, %v1052
        %v1345 = vmul.f32 %v1054, %v1056
        %v1346 = vmul.f32 %v1060, %v1062
        %v1347 = vmul.f32 %v1064, %v1066
        %v1348 = vmul.f32 %v1070, %v1072
        %v1349 = vmul.f32 %v1074, %v1076
        %v1350 = vmul.f32 %v1080, %v1082
        %v1351 = vmul.f32 %v1084, %v1086
        %v1352 = vmul.f32 %v1090, %v1092
        %v1353 = vmul.f32 %v1094, %v1096
        %v1354 = vmul.f32 %v1100, %v1102
        %v1355 = vmul.f32 %v1104, %v1106
        %v1356 = vmul.f32 %v1110, %v1112
        %v1357 = vmul.f32 %v1114, %v1116
        %v1358 = vadd.f32 %v1310, %v1326
        %v1359 = vadd.f32 %v1358, %v1342
        %v1360 = vadd.f32 %v1311, %v1327
        %v1361 = vadd.f32 %v1360, %v1343
        %v1362 = vadd.f32 %v1312, %v1328
        %v1363 = vadd.f32 %v1362, %v1344
        %v1364 = vadd.f32 %v1313, %v1329
        %v1365 = vadd.f32 %v1364, %v1345
        %v1366 = vadd.f32 %v1314, %v1330
        %v1367 = vadd.f32 %v1366, %v1346
        %v1368 = vadd.f32 %v1315, %v1331
        %v1369 = vadd.f32 %v1368, %v1347
        %v1370 = vadd.f32 %v1316, %v1332
        %v1371 = vadd.f32 %v1370, %v1348
        %v1372 = vadd.f32 %v1317, %v1333
        %v1373 = vadd.f32 %v1372, %v1349
        %v1374 = vadd.f32 %v1318, %v1334
        %v1375 = vadd.f32 %v1374, %v1350
        %v1376 = vadd.f32 %v1319, %v1335
        %v1377 = vadd.f32 %v1376, %v1351
        %v1378 = vadd.f32 %v1320, %v1336
        %v1379 = vadd.f32 %v1378, %v1352
        %v1380 = vadd.f32 %v1321, %v1337
        %v1381 = vadd.f32 %v1380, %v1353
        %v1382 = vadd.f32 %v1322, %v1338
        %v1383 = vadd.f32 %v1382, %v1354
        %v1384 = vadd.f32 %v1323, %v1339
        %v1385 = vadd.f32 %v1384, %v1355
        %v1386 = vadd.f32 %v1324, %v1340
        %v1387 = vadd.f32 %v1386, %v1356
        %v1388 = vadd.f32 %v1325, %v1341
        %v1389 = vadd.f32 %v1388, %v1357
        %v1390 = vpack.c.bf16 %v1211, %v1204
        %v1391 = vpack.c.bf16 %v1225, %v1218
        %v1392 = vpack.c.bf16 %v1239, %v1232
        %v1393 = vpack.c.bf16 %v1253, %v1246
        %v1394 = vpack.c.bf16 %v1267, %v1260
        %v1395 = vpack.c.bf16 %v1281, %v1274
        %v1396 = vpack.c.bf16 %v1295, %v1288
        %v1397 = vpack.c.bf16 %v1309, %v1302
        %v1406 = vunpack.c.l.b16 %v1390
        %v1407 = vunpack.c.h.b16 %v1390
        %v1408 = vunpack.c.l.b16 %v1391
        %v1409 = vunpack.c.h.b16 %v1391
        %v1410 = vunpack.c.l.b16 %v1392
        %v1411 = vunpack.c.h.b16 %v1392
        %v1412 = vunpack.c.l.b16 %v1393
        %v1413 = vunpack.c.h.b16 %v1393
        %v1414 = vunpack.c.l.b16 %v1394
        %v1415 = vunpack.c.h.b16 %v1394
        %v1416 = vunpack.c.l.b16 %v1395
        %v1417 = vunpack.c.h.b16 %v1395
        %v1418 = vunpack.c.l.b16 %v1396
        %v1419 = vunpack.c.h.b16 %v1396
        %v1420 = vunpack.c.l.b16 %v1397
        %v1421 = vunpack.c.h.b16 %v1397
        %v1422 = vpack.c.b16 %v1406, %v1406
        %v1423 = vpack.c.b16 %v1407, %v1407
        %v1424 = vpack.c.b16 %v1408, %v1408
        %v1425 = vpack.c.b16 %v1409, %v1409
        %v1426 = vpack.c.b16 %v1410, %v1410
        %v1427 = vpack.c.b16 %v1411, %v1411
        %v1428 = vpack.c.b16 %v1412, %v1412
        %v1429 = vpack.c.b16 %v1413, %v1413
        %v1430 = vpack.c.b16 %v1414, %v1414
        %v1431 = vpack.c.b16 %v1415, %v1415
        %v1432 = vpack.c.b16 %v1416, %v1416
        %v1433 = vpack.c.b16 %v1417, %v1417
        %v1434 = vpack.c.b16 %v1418, %v1418
        %v1435 = vpack.c.b16 %v1419, %v1419
        %v1436 = vpack.c.b16 %v1420, %v1420
        %v1437 = vpack.c.b16 %v1421, %v1421
        %1454 = vst [vmem:[#allocation2] sm:$0xf] %v1422
        %1455 = vst [vmem:[#allocation2 + $0x8] sm:$0xf] %v1423
        %1456 = vst [vmem:[#allocation2 + $0x10] sm:$0xf] %v1424
        %1457 = vst [vmem:[#allocation2 + $0x18] sm:$0xf] %v1425
        %1458 = vst [vmem:[#allocation2 + $0x20] sm:$0xf] %v1426
        %1459 = vst [vmem:[#allocation2 + $0x28] sm:$0xf] %v1427
        %1460 = vst [vmem:[#allocation2 + $0x30] sm:$0xf] %v1428
        %1461 = vst [vmem:[#allocation2 + $0x38] sm:$0xf] %v1429
        %1462 = vst [vmem:[#allocation2 + $0x40] sm:$0xf] %v1430
        %1463 = vst [vmem:[#allocation2 + $0x48] sm:$0xf] %v1431
        %1464 = vst [vmem:[#allocation2 + $0x50] sm:$0xf] %v1432
        %1465 = vst [vmem:[#allocation2 + $0x58] sm:$0xf] %v1433
        %1466 = vst [vmem:[#allocation2 + $0x60] sm:$0xf] %v1434
        %1467 = vst [vmem:[#allocation2 + $0x68] sm:$0xf] %v1435
        %1468 = vst [vmem:[#allocation2 + $0x70] sm:$0xf] %v1436
        %1469 = vst [vmem:[#allocation2 + $0x78] sm:$0xf] %v1437
        %1470 = vst [vmem:[#allocation2 + $0x4] sm:$0xf] %v529
        %1471 = vst [vmem:[#allocation2 + $0xc] sm:$0xf] %v530
        %1472 = vst [vmem:[#allocation2 + $0x14] sm:$0xf] %v531
        %1473 = vst [vmem:[#allocation2 + $0x1c] sm:$0xf] %v532
        %1474 = vst [vmem:[#allocation2 + $0x24] sm:$0xf] %v533
        %1475 = vst [vmem:[#allocation2 + $0x2c] sm:$0xf] %v534
        %1476 = vst [vmem:[#allocation2 + $0x34] sm:$0xf] %v535
        %1477 = vst [vmem:[#allocation2 + $0x3c] sm:$0xf] %v536
        %1478 = vst [vmem:[#allocation2 + $0x44] sm:$0xf] %v537
        %1479 = vst [vmem:[#allocation2 + $0x4c] sm:$0xf] %v538
        %1480 = vst [vmem:[#allocation2 + $0x54] sm:$0xf] %v539
        %1481 = vst [vmem:[#allocation2 + $0x5c] sm:$0xf] %v540
        %1482 = vst [vmem:[#allocation2 + $0x64] sm:$0xf] %v541
        %1483 = vst [vmem:[#allocation2 + $0x6c] sm:$0xf] %v542
        %1484 = vst [vmem:[#allocation2 + $0x74] sm:$0xf] %v543
        %1485 = vst [vmem:[#allocation2 + $0x7c] sm:$0xf] %v544
        %v1486 = vld [vmem:[#allocation2] sm:$0xff]
        %v1487 = vld [vmem:[#allocation2 + $0x8] sm:$0xff]
        %v1488 = vld [vmem:[#allocation2 + $0x10] sm:$0xff]
        %v1489 = vld [vmem:[#allocation2 + $0x18] sm:$0xff]
        %v1490 = vld [vmem:[#allocation2 + $0x20] sm:$0xff]
        %v1491 = vld [vmem:[#allocation2 + $0x28] sm:$0xff]
        %v1492 = vld [vmem:[#allocation2 + $0x30] sm:$0xff]
        %v1493 = vld [vmem:[#allocation2 + $0x38] sm:$0xff]
        %v1494 = vld [vmem:[#allocation2 + $0x40] sm:$0xff]
        %v1495 = vld [vmem:[#allocation2 + $0x48] sm:$0xff]
        %v1496 = vld [vmem:[#allocation2 + $0x50] sm:$0xff]
        %v1497 = vld [vmem:[#allocation2 + $0x58] sm:$0xff]
        %v1498 = vld [vmem:[#allocation2 + $0x60] sm:$0xff]
        %v1499 = vld [vmem:[#allocation2 + $0x68] sm:$0xff]
        %v1500 = vld [vmem:[#allocation2 + $0x70] sm:$0xff]
        %v1501 = vld [vmem:[#allocation2 + $0x78] sm:$0xff]
        %v1502 = vld [vmem:[#allocation9] sm:$0xf]
        %v1503 = vld [vmem:[#allocation9 + $0x4] sm:$0xf]
        %v1504 = vld [vmem:[#allocation9 + $0x8] sm:$0xf]
        %v1505 = vld [vmem:[#allocation9 + $0xc] sm:$0xf]
        %v1506 = vld [vmem:[#allocation9 + $0x10] sm:$0xf]
        %v1507 = vld [vmem:[#allocation9 + $0x14] sm:$0xf]
        %v1508 = vld [vmem:[#allocation9 + $0x18] sm:$0xf]
        %v1509 = vld [vmem:[#allocation9 + $0x1c] sm:$0xf]
        %v1510 = vld [vmem:[#allocation9 + $0x20] sm:$0xf]
        %v1511 = vld [vmem:[#allocation9 + $0x24] sm:$0xf]
        %v1512 = vld [vmem:[#allocation9 + $0x28] sm:$0xf]
        %v1513 = vld [vmem:[#allocation9 + $0x2c] sm:$0xf]
        %v1514 = vld [vmem:[#allocation9 + $0x30] sm:$0xf]
        %v1515 = vld [vmem:[#allocation9 + $0x34] sm:$0xf]
        %v1516 = vld [vmem:[#allocation9 + $0x38] sm:$0xf]
        %v1517 = vld [vmem:[#allocation9 + $0x3c] sm:$0xf]
        %v1518 = vld [vmem:[#allocation9 + $0x40] sm:$0xf]
        %v1519 = vld [vmem:[#allocation9 + $0x44] sm:$0xf]
        %v1520 = vld [vmem:[#allocation9 + $0x48] sm:$0xf]
        %v1521 = vld [vmem:[#allocation9 + $0x4c] sm:$0xf]
        %v1522 = vld [vmem:[#allocation9 + $0x50] sm:$0xf]
        %v1523 = vld [vmem:[#allocation9 + $0x54] sm:$0xf]
        %v1524 = vld [vmem:[#allocation9 + $0x58] sm:$0xf]
        %v1525 = vld [vmem:[#allocation9 + $0x5c] sm:$0xf]
        %v1526 = vld [vmem:[#allocation9 + $0x60] sm:$0xf]
        %v1527 = vld [vmem:[#allocation9 + $0x64] sm:$0xf]
        %v1528 = vld [vmem:[#allocation9 + $0x68] sm:$0xf]
        %v1529 = vld [vmem:[#allocation9 + $0x6c] sm:$0xf]
        %v1530 = vld [vmem:[#allocation9 + $0x70] sm:$0xf]
        %v1531 = vld [vmem:[#allocation9 + $0x74] sm:$0xf]
        %v1532 = vld [vmem:[#allocation9 + $0x78] sm:$0xf]
        %v1533 = vld [vmem:[#allocation9 + $0x7c] sm:$0xf]
        %v1534 = vld [vmem:[#allocation11] sm:$0x1]
        %v1536 = vlaneseq
        %v1537 = vshrl.u32 %v1536, 7
        %v1538 = vsub.s32 0, %v1537
        %v1539 = vrot.slane %v1534, %v1538
        %v1557 = vunpack.c.l.b16 %v1486
        %v1558 = vunpack.c.h.b16 %v1486
        %v1559 = vunpack.c.l.b16 %v1487
        %v1560 = vunpack.c.h.b16 %v1487
        %v1561 = vunpack.c.l.b16 %v1488
        %v1562 = vunpack.c.h.b16 %v1488
        %v1563 = vunpack.c.l.b16 %v1489
        %v1564 = vunpack.c.h.b16 %v1489
        %v1565 = vunpack.c.l.b16 %v1490
        %v1566 = vunpack.c.h.b16 %v1490
        %v1567 = vunpack.c.l.b16 %v1491
        %v1568 = vunpack.c.h.b16 %v1491
        %v1569 = vunpack.c.l.b16 %v1492
        %v1570 = vunpack.c.h.b16 %v1492
        %v1571 = vunpack.c.l.b16 %v1493
        %v1572 = vunpack.c.h.b16 %v1493
        %v1573 = vunpack.c.l.b16 %v1494
        %v1574 = vunpack.c.h.b16 %v1494
        %v1575 = vunpack.c.l.b16 %v1495
        %v1576 = vunpack.c.h.b16 %v1495
        %v1577 = vunpack.c.l.b16 %v1496
        %v1578 = vunpack.c.h.b16 %v1496
        %v1579 = vunpack.c.l.b16 %v1497
        %v1580 = vunpack.c.h.b16 %v1497
        %v1581 = vunpack.c.l.b16 %v1498
        %v1582 = vunpack.c.h.b16 %v1498
        %v1583 = vunpack.c.l.b16 %v1499
        %v1584 = vunpack.c.h.b16 %v1499
        %v1585 = vunpack.c.l.b16 %v1500
        %v1586 = vunpack.c.h.b16 %v1500
        %v1587 = vunpack.c.l.b16 %v1501
        %v1588 = vunpack.c.h.b16 %v1501
        %v1589 = vpack.c.b16 %v1559, %v1557
        %v1590 = vpack.c.b16 %v1560, %v1558
        %v1591 = vpack.c.b16 %v1563, %v1561
        %v1592 = vpack.c.b16 %v1564, %v1562
        %v1593 = vpack.c.b16 %v1567, %v1565
        %v1594 = vpack.c.b16 %v1568, %v1566
        %v1595 = vpack.c.b16 %v1571, %v1569
        %v1596 = vpack.c.b16 %v1572, %v1570
        %v1597 = vpack.c.b16 %v1575, %v1573
        %v1598 = vpack.c.b16 %v1576, %v1574
        %v1599 = vpack.c.b16 %v1579, %v1577
        %v1600 = vpack.c.b16 %v1580, %v1578
        %v1601 = vpack.c.b16 %v1583, %v1581
        %v1602 = vpack.c.b16 %v1584, %v1582
        %v1603 = vpack.c.b16 %v1587, %v1585
        %v1604 = vpack.c.b16 %v1588, %v1586
        %v1653 = vunpack.c.l.b16 %v1502
        %v1654 = vunpack.c.l.b16 %v1503
        %v1655 = vunpack.c.l.b16 %v1504
        %v1656 = vunpack.c.l.b16 %v1505
        %v1657 = vunpack.c.l.b16 %v1506
        %v1658 = vunpack.c.l.b16 %v1507
        %v1659 = vunpack.c.l.b16 %v1508
        %v1660 = vunpack.c.l.b16 %v1509
        %v1661 = vunpack.c.l.b16 %v1510
        %v1662 = vunpack.c.l.b16 %v1511
        %v1663 = vunpack.c.l.b16 %v1512
        %v1664 = vunpack.c.l.b16 %v1513
        %v1665 = vunpack.c.l.b16 %v1514
        %v1666 = vunpack.c.l.b16 %v1515
        %v1667 = vunpack.c.l.b16 %v1516
        %v1668 = vunpack.c.l.b16 %v1517
        %v1669 = vunpack.c.l.b16 %v1518
        %v1670 = vunpack.c.l.b16 %v1519
        %v1671 = vunpack.c.l.b16 %v1520
        %v1672 = vunpack.c.l.b16 %v1521
        %v1673 = vunpack.c.l.b16 %v1522
        %v1674 = vunpack.c.l.b16 %v1523
        %v1675 = vunpack.c.l.b16 %v1524
        %v1676 = vunpack.c.l.b16 %v1525
        %v1677 = vunpack.c.l.b16 %v1526
        %v1678 = vunpack.c.l.b16 %v1527
        %v1679 = vunpack.c.l.b16 %v1528
        %v1680 = vunpack.c.l.b16 %v1529
        %v1681 = vunpack.c.l.b16 %v1530
        %v1682 = vunpack.c.l.b16 %v1531
        %v1683 = vunpack.c.l.b16 %v1532
        %v1684 = vunpack.c.l.b16 %v1533
        %v1685 = vpack.c.b16 %v1654, %v1653
        %v1686 = vpack.c.b16 %v1656, %v1655
        %v1687 = vpack.c.b16 %v1658, %v1657
        %v1688 = vpack.c.b16 %v1660, %v1659
        %v1689 = vpack.c.b16 %v1662, %v1661
        %v1690 = vpack.c.b16 %v1664, %v1663
        %v1691 = vpack.c.b16 %v1666, %v1665
        %v1692 = vpack.c.b16 %v1668, %v1667
        %v1693 = vpack.c.b16 %v1670, %v1669
        %v1694 = vpack.c.b16 %v1672, %v1671
        %v1695 = vpack.c.b16 %v1674, %v1673
        %v1696 = vpack.c.b16 %v1676, %v1675
        %v1697 = vpack.c.b16 %v1678, %v1677
        %v1698 = vpack.c.b16 %v1680, %v1679
        %v1699 = vpack.c.b16 %v1682, %v1681
        %v1700 = vpack.c.b16 %v1684, %v1683
        %1717 = vmatprep.subr.bf16.mxu0 0
        %1718 = vmatpush1.bf16.msra.mxu0 %v1692
        %1719 = vmatprep.subr.bf16.mxu0 0
        %1720 = vmatpush1.bf16.msra.mxu0 %v1691
        %1721 = vmatprep.subr.bf16.mxu0 0
        %1722 = vmatpush1.bf16.msra.mxu0 %v1690
        %1723 = vmatprep.subr.bf16.mxu0 0
        %1724 = vmatpush1.bf16.msra.mxu0 %v1689
        %1725 = vmatprep.subr.bf16.mxu0 0
        %1726 = vmatpush1.bf16.msra.mxu0 %v1688
        %1727 = vmatprep.subr.bf16.mxu0 0
        %1728 = vmatpush1.bf16.msra.mxu0 %v1687
        %1729 = vmatprep.subr.bf16.mxu0 0
        %1730 = vmatpush1.bf16.msra.mxu0 %v1686
        %1731 = vmatprep.subr.bf16.mxu0 0
        %1732 = vmatpush1.bf16.msra.mxu0 %v1685
        %1733 = vmatprep.subr.bf16.mxu0 0
        %1734 = vmatpush2.bf16.msra.mxu0 %v1700
        %1735 = vmatprep.subr.bf16.mxu0 0
        %1736 = vmatpush2.bf16.msra.mxu0 %v1699
        %1737 = vmatprep.subr.bf16.mxu0 0
        %1738 = vmatpush2.bf16.msra.mxu0 %v1698
        %1739 = vmatprep.subr.bf16.mxu0 0
        %1740 = vmatpush2.bf16.msra.mxu0 %v1697
        %1741 = vmatprep.subr.bf16.mxu0 0
        %1742 = vmatpush2.bf16.msra.mxu0 %v1696
        %1743 = vmatprep.subr.bf16.mxu0 0
        %1744 = vmatpush2.bf16.msra.mxu0 %v1695
        %1745 = vmatprep.subr.bf16.mxu0 0
        %1746 = vmatpush2.bf16.msra.mxu0 %v1694
        %1747 = vmatprep.subr.bf16.mxu0 0
        %1748 = vmatpush2.bf16.msra.mxu0 %v1693
        %1749 = vmatprep.mubr.bf16.mxu0 %v1590
        %1750 = vmatmul.mubr.bf16.gmra.mxu0 %v1589
        %v1751 = vpop.f32.mrf.mxu0
        %v1752 = vadd.f32 %v1539, %v1751
        %v1753 = vpop.f32.mrf.mxu0
        %v1754 = vpop.f32.mrf.mxu0
        %v1755 = vadd.f32 %v1539, %v1754
        %v1756 = vpop.f32.mrf.mxu0
        %1757 = vmatprep.mubr.bf16.mxu0 %v1592
        %1758 = vmatmul.mubr.bf16.gmra.mxu0 %v1591
        %v1759 = vpop.f32.mrf.mxu0
        %v1760 = vadd.f32 %v1539, %v1759
        %v1761 = vpop.f32.mrf.mxu0
        %v1762 = vpop.f32.mrf.mxu0
        %v1763 = vadd.f32 %v1539, %v1762
        %v1764 = vpop.f32.mrf.mxu0
        %1765 = vmatprep.mubr.bf16.mxu0 %v1594
        %1766 = vmatmul.mubr.bf16.gmra.mxu0 %v1593
        %v1767 = vpop.f32.mrf.mxu0
        %v1768 = vadd.f32 %v1539, %v1767
        %v1769 = vpop.f32.mrf.mxu0
        %v1770 = vpop.f32.mrf.mxu0
        %v1771 = vadd.f32 %v1539, %v1770
        %v1772 = vpop.f32.mrf.mxu0
        %1773 = vmatprep.mubr.bf16.mxu0 %v1596
        %1774 = vmatmul.mubr.bf16.gmra.mxu0 %v1595
        %v1775 = vpop.f32.mrf.mxu0
        %v1776 = vadd.f32 %v1539, %v1775
        %v1777 = vpop.f32.mrf.mxu0
        %v1778 = vpop.f32.mrf.mxu0
        %v1779 = vadd.f32 %v1539, %v1778
        %v1780 = vpop.f32.mrf.mxu0
        %1781 = vmatprep.mubr.bf16.mxu0 %v1598
        %1782 = vmatmul.mubr.bf16.gmra.mxu0 %v1597
        %v1783 = vpop.f32.mrf.mxu0
        %v1784 = vadd.f32 %v1539, %v1783
        %v1785 = vpop.f32.mrf.mxu0
        %v1786 = vpop.f32.mrf.mxu0
        %v1787 = vadd.f32 %v1539, %v1786
        %v1788 = vpop.f32.mrf.mxu0
        %1789 = vmatprep.mubr.bf16.mxu0 %v1600
        %1790 = vmatmul.mubr.bf16.gmra.mxu0 %v1599
        %v1791 = vpop.f32.mrf.mxu0
        %v1792 = vadd.f32 %v1539, %v1791
        %v1793 = vpop.f32.mrf.mxu0
        %v1794 = vpop.f32.mrf.mxu0
        %v1795 = vadd.f32 %v1539, %v1794
        %v1796 = vpop.f32.mrf.mxu0
        %1797 = vmatprep.mubr.bf16.mxu0 %v1602
        %1798 = vmatmul.mubr.bf16.gmra.mxu0 %v1601
        %v1799 = vpop.f32.mrf.mxu0
        %v1800 = vadd.f32 %v1539, %v1799
        %v1801 = vpop.f32.mrf.mxu0
        %v1802 = vpop.f32.mrf.mxu0
        %v1803 = vadd.f32 %v1539, %v1802
        %v1804 = vpop.f32.mrf.mxu0
        %1805 = vmatprep.mubr.bf16.mxu0 %v1604
        %1806 = vmatmul.mubr.bf16.gmra.mxu0 %v1603
        %v1807 = vpop.f32.mrf.mxu0
        %v1808 = vadd.f32 %v1539, %v1807
        %v1809 = vpop.f32.mrf.mxu0
        %v1810 = vpop.f32.mrf.mxu0
        %v1811 = vadd.f32 %v1539, %v1810
        %v1812 = vpop.f32.mrf.mxu0
        %1813 = vdwg.mxu0
        %v1814 = vxor.u32 %v1752, 2147483648
        %v1815 = vxor.u32 %v1755, 2147483648
        %v1816 = vxor.u32 %v1760, 2147483648
        %v1817 = vxor.u32 %v1763, 2147483648
        %v1818 = vxor.u32 %v1768, 2147483648
        %v1819 = vxor.u32 %v1771, 2147483648
        %v1820 = vxor.u32 %v1776, 2147483648
        %v1821 = vxor.u32 %v1779, 2147483648
        %v1822 = vxor.u32 %v1784, 2147483648
        %v1823 = vxor.u32 %v1787, 2147483648
        %v1824 = vxor.u32 %v1792, 2147483648
        %v1825 = vxor.u32 %v1795, 2147483648
        %v1826 = vxor.u32 %v1800, 2147483648
        %v1827 = vxor.u32 %v1803, 2147483648
        %v1828 = vxor.u32 %v1808, 2147483648
        %v1829 = vxor.u32 %v1811, 2147483648
        %v1830 = vmul.f32 %v1814, 1.442695
        %v1831 = vpow.pop %v1830
        %v1832 = vmul.f32 %v1815, 1.442695
        %v1833 = vpow.pop %v1832
        %v1834 = vmul.f32 %v1816, 1.442695
        %v1835 = vpow.pop %v1834
        %v1836 = vmul.f32 %v1817, 1.442695
        %v1837 = vpow.pop %v1836
        %v1838 = vmul.f32 %v1818, 1.442695
        %v1839 = vpow.pop %v1838
        %v1840 = vmul.f32 %v1819, 1.442695
        %v1841 = vpow.pop %v1840
        %v1842 = vmul.f32 %v1820, 1.442695
        %v1843 = vpow.pop %v1842
        %v1844 = vmul.f32 %v1821, 1.442695
        %v1845 = vpow.pop %v1844
        %v1846 = vmul.f32 %v1822, 1.442695
        %v1847 = vpow.pop %v1846
        %v1848 = vmul.f32 %v1823, 1.442695
        %v1849 = vpow.pop %v1848
        %v1850 = vmul.f32 %v1824, 1.442695
        %v1851 = vpow.pop %v1850
        %v1852 = vmul.f32 %v1825, 1.442695
        %v1853 = vpow.pop %v1852
        %v1854 = vmul.f32 %v1826, 1.442695
        %v1855 = vpow.pop %v1854
        %v1856 = vmul.f32 %v1827, 1.442695
        %v1857 = vpow.pop %v1856
        %v1858 = vmul.f32 %v1828, 1.442695
        %v1859 = vpow.pop %v1858
        %v1860 = vmul.f32 %v1829, 1.442695
        %v1861 = vpow.pop %v1860
        %v1862 = vadd.f32 %v1831, 1.0
        %v1863 = vadd.f32 %v1833, 1.0
        %v1864 = vadd.f32 %v1835, 1.0
        %v1865 = vadd.f32 %v1837, 1.0
        %v1866 = vadd.f32 %v1839, 1.0
        %v1867 = vadd.f32 %v1841, 1.0
        %v1868 = vadd.f32 %v1843, 1.0
        %v1869 = vadd.f32 %v1845, 1.0
        %v1870 = vadd.f32 %v1847, 1.0
        %v1871 = vadd.f32 %v1849, 1.0
        %v1872 = vadd.f32 %v1851, 1.0
        %v1873 = vadd.f32 %v1853, 1.0
        %v1874 = vadd.f32 %v1855, 1.0
        %v1875 = vadd.f32 %v1857, 1.0
        %v1876 = vadd.f32 %v1859, 1.0
        %v1877 = vadd.f32 %v1861, 1.0
        %v1878 = vrcp.pop %v1862
        %v1879 = vmul.f32 1.0, %v1878
        %v1880 = vrcp.pop %v1863
        %v1881 = vmul.f32 1.0, %v1880
        %v1882 = vrcp.pop %v1864
        %v1883 = vmul.f32 1.0, %v1882
        %v1884 = vrcp.pop %v1865
        %v1885 = vmul.f32 1.0, %v1884
        %v1886 = vrcp.pop %v1866
        %v1887 = vmul.f32 1.0, %v1886
        %v1888 = vrcp.pop %v1867
        %v1889 = vmul.f32 1.0, %v1888
        %v1890 = vrcp.pop %v1868
        %v1891 = vmul.f32 1.0, %v1890
        %v1892 = vrcp.pop %v1869
        %v1893 = vmul.f32 1.0, %v1892
        %v1894 = vrcp.pop %v1870
        %v1895 = vmul.f32 1.0, %v1894
        %v1896 = vrcp.pop %v1871
        %v1897 = vmul.f32 1.0, %v1896
        %v1898 = vrcp.pop %v1872
        %v1899 = vmul.f32 1.0, %v1898
        %v1900 = vrcp.pop %v1873
        %v1901 = vmul.f32 1.0, %v1900
        %v1902 = vrcp.pop %v1874
        %v1903 = vmul.f32 1.0, %v1902
        %v1904 = vrcp.pop %v1875
        %v1905 = vmul.f32 1.0, %v1904
        %v1906 = vrcp.pop %v1876
        %v1907 = vmul.f32 1.0, %v1906
        %v1908 = vrcp.pop %v1877
        %v1909 = vmul.f32 1.0, %v1908
        %v1910 = vmul.f32 %v1752, %v1879
        %v1911 = vmul.f32 %v1755, %v1881
        %v1912 = vmul.f32 %v1760, %v1883
        %v1913 = vmul.f32 %v1763, %v1885
        %v1914 = vmul.f32 %v1768, %v1887
        %v1915 = vmul.f32 %v1771, %v1889
        %v1916 = vmul.f32 %v1776, %v1891
        %v1917 = vmul.f32 %v1779, %v1893
        %v1918 = vmul.f32 %v1784, %v1895
        %v1919 = vmul.f32 %v1787, %v1897
        %v1920 = vmul.f32 %v1792, %v1899
        %v1921 = vmul.f32 %v1795, %v1901
        %v1922 = vmul.f32 %v1800, %v1903
        %v1923 = vmul.f32 %v1803, %v1905
        %v1924 = vmul.f32 %v1808, %v1907
        %v1925 = vmul.f32 %v1811, %v1909
        %v1926 = vpack.c.bf16 %v1911, %v1910
        %v1927 = vpack.c.bf16 %v1913, %v1912
        %v1928 = vpack.c.bf16 %v1915, %v1914
        %v1929 = vpack.c.bf16 %v1917, %v1916
        %v1930 = vpack.c.bf16 %v1919, %v1918
        %v1931 = vpack.c.bf16 %v1921, %v1920
        %v1932 = vpack.c.bf16 %v1923, %v1922
        %v1933 = vpack.c.bf16 %v1925, %v1924
        %v1934 = vld [vmem:[#allocation12] sm:$0xff]
        %v1935 = vld [vmem:[#allocation12 + $0x8] sm:$0xf]
        %v1936 = vld [vmem:[#allocation12 + $0xc] sm:$0xff]
        %v1937 = vld [vmem:[#allocation12 + $0x14] sm:$0xf]
        %v1938 = vld [vmem:[#allocation12 + $0x18] sm:$0xff]
        %v1939 = vld [vmem:[#allocation12 + $0x20] sm:$0xf]
        %v1940 = vld [vmem:[#allocation12 + $0x24] sm:$0xff]
        %v1941 = vld [vmem:[#allocation12 + $0x2c] sm:$0xf]
        %v1942 = vld [vmem:[#allocation12 + $0x30] sm:$0xff]
        %v1943 = vld [vmem:[#allocation12 + $0x38] sm:$0xf]
        %v1944 = vld [vmem:[#allocation12 + $0x3c] sm:$0xff]
        %v1945 = vld [vmem:[#allocation12 + $0x44] sm:$0xf]
        %v1946 = vld [vmem:[#allocation12 + $0x48] sm:$0xff]
        %v1947 = vld [vmem:[#allocation12 + $0x50] sm:$0xf]
        %v1948 = vld [vmem:[#allocation12 + $0x54] sm:$0xff]
        %v1949 = vld [vmem:[#allocation12 + $0x5c] sm:$0xf]
        %v1950 = vld [vmem:[#allocation12 + $0x60] sm:$0xff]
        %v1951 = vld [vmem:[#allocation12 + $0x68] sm:$0xf]
        %v1952 = vld [vmem:[#allocation12 + $0x6c] sm:$0xff]
        %v1953 = vld [vmem:[#allocation12 + $0x74] sm:$0xf]
        %v1954 = vld [vmem:[#allocation12 + $0x78] sm:$0xff]
        %v1955 = vld [vmem:[#allocation12 + $0x80] sm:$0xf]
        %v1956 = vld [vmem:[#allocation12 + $0x84] sm:$0xff]
        %v1957 = vld [vmem:[#allocation12 + $0x8c] sm:$0xf]
        %v1958 = vld [vmem:[#allocation12 + $0x90] sm:$0xff]
        %v1959 = vld [vmem:[#allocation12 + $0x98] sm:$0xf]
        %v1960 = vld [vmem:[#allocation12 + $0x9c] sm:$0xff]
        %v1961 = vld [vmem:[#allocation12 + $0xa4] sm:$0xf]
        %v1962 = vld [vmem:[#allocation12 + $0xa8] sm:$0xff]
        %v1963 = vld [vmem:[#allocation12 + $0xb0] sm:$0xf]
        %v1964 = vld [vmem:[#allocation12 + $0xb4] sm:$0xff]
        %v1965 = vld [vmem:[#allocation12 + $0xbc] sm:$0xf]
        %v1966 = vld [vmem:[#allocation14] sm:$0x7]
        %v1968 = vlaneseq
        %v1969 = vshrl.u32 %v1968, 7
        %v1970 = vsub.s32 0, %v1969
        %v1971 = vrot.slane %v1966, %v1970
        %v1972 = vlaneseq
        %v1973 = vshrl.u32 %v1972, 7
        %v1974 = vsub.s32 1, %v1973
        %v1975 = vrot.slane %v1966, %v1974
        %v1976 = vlaneseq
        %v1977 = vshrl.u32 %v1976, 7
        %v1978 = vsub.s32 2, %v1977
        %v1979 = vrot.slane %v1966, %v1978
        %v2015 = vunpack.c.l.b16 %v1934
        %v2016 = vunpack.c.h.b16 %v1934
        %v2017 = vunpack.c.l.b16 %v1935
        %v2018 = vunpack.c.l.b16 %v1936
        %v2019 = vunpack.c.h.b16 %v1936
        %v2020 = vunpack.c.l.b16 %v1937
        %v2021 = vunpack.c.l.b16 %v1938
        %v2022 = vunpack.c.h.b16 %v1938
        %v2023 = vunpack.c.l.b16 %v1939
        %v2024 = vunpack.c.l.b16 %v1940
        %v2025 = vunpack.c.h.b16 %v1940
        %v2026 = vunpack.c.l.b16 %v1941
        %v2027 = vunpack.c.l.b16 %v1942
        %v2028 = vunpack.c.h.b16 %v1942
        %v2029 = vunpack.c.l.b16 %v1943
        %v2030 = vunpack.c.l.b16 %v1944
        %v2031 = vunpack.c.h.b16 %v1944
        %v2032 = vunpack.c.l.b16 %v1945
        %v2033 = vunpack.c.l.b16 %v1946
        %v2034 = vunpack.c.h.b16 %v1946
        %v2035 = vunpack.c.l.b16 %v1947
        %v2036 = vunpack.c.l.b16 %v1948
        %v2037 = vunpack.c.h.b16 %v1948
        %v2038 = vunpack.c.l.b16 %v1949
        %v2039 = vunpack.c.l.b16 %v1950
        %v2040 = vunpack.c.h.b16 %v1950
        %v2041 = vunpack.c.l.b16 %v1951
        %v2042 = vunpack.c.l.b16 %v1952
        %v2043 = vunpack.c.h.b16 %v1952
        %v2044 = vunpack.c.l.b16 %v1953
        %v2045 = vunpack.c.l.b16 %v1954
        %v2046 = vunpack.c.h.b16 %v1954
        %v2047 = vunpack.c.l.b16 %v1955
        %v2048 = vunpack.c.l.b16 %v1956
        %v2049 = vunpack.c.h.b16 %v1956
        %v2050 = vunpack.c.l.b16 %v1957
        %v2051 = vunpack.c.l.b16 %v1958
        %v2052 = vunpack.c.h.b16 %v1958
        %v2053 = vunpack.c.l.b16 %v1959
        %v2054 = vunpack.c.l.b16 %v1960
        %v2055 = vunpack.c.h.b16 %v1960
        %v2056 = vunpack.c.l.b16 %v1961
        %v2057 = vunpack.c.l.b16 %v1962
        %v2058 = vunpack.c.h.b16 %v1962
        %v2059 = vunpack.c.l.b16 %v1963
        %v2060 = vunpack.c.l.b16 %v1964
        %v2061 = vunpack.c.h.b16 %v1964
        %v2062 = vunpack.c.l.b16 %v1965
        %v2063 = vpack.c.b16 %v2018, %v2015
        %v2064 = vpack.c.b16 %v2019, %v2016
        %v2065 = vpack.c.b16 %v2020, %v2017
        %v2066 = vpack.c.b16 %v2024, %v2021
        %v2067 = vpack.c.b16 %v2025, %v2022
        %v2068 = vpack.c.b16 %v2026, %v2023
        %v2069 = vpack.c.b16 %v2030, %v2027
        %v2070 = vpack.c.b16 %v2031, %v2028
        %v2071 = vpack.c.b16 %v2032, %v2029
        %v2072 = vpack.c.b16 %v2036, %v2033
        %v2073 = vpack.c.b16 %v2037, %v2034
        %v2074 = vpack.c.b16 %v2038, %v2035
        %v2075 = vpack.c.b16 %v2042, %v2039
        %v2076 = vpack.c.b16 %v2043, %v2040
        %v2077 = vpack.c.b16 %v2044, %v2041
        %v2078 = vpack.c.b16 %v2048, %v2045
        %v2079 = vpack.c.b16 %v2049, %v2046
        %v2080 = vpack.c.b16 %v2050, %v2047
        %v2081 = vpack.c.b16 %v2054, %v2051
        %v2082 = vpack.c.b16 %v2055, %v2052
        %v2083 = vpack.c.b16 %v2056, %v2053
        %v2084 = vpack.c.b16 %v2060, %v2057
        %v2085 = vpack.c.b16 %v2061, %v2058
        %v2086 = vpack.c.b16 %v2062, %v2059
        %2111 = vmatprep.subr.bf16.mxu0 %v2085
        %2112 = vmatpush1.bf16.msra.mxu0 %v2084
        %2113 = vmatprep.subr.bf16.mxu0 %v2082
        %2114 = vmatpush1.bf16.msra.mxu0 %v2081
        %2115 = vmatprep.subr.bf16.mxu0 %v2079
        %2116 = vmatpush1.bf16.msra.mxu0 %v2078
        %2117 = vmatprep.subr.bf16.mxu0 %v2076
        %2118 = vmatpush1.bf16.msra.mxu0 %v2075
        %2119 = vmatprep.subr.bf16.mxu0 %v2073
        %2120 = vmatpush1.bf16.msra.mxu0 %v2072
        %2121 = vmatprep.subr.bf16.mxu0 %v2070
        %2122 = vmatpush1.bf16.msra.mxu0 %v2069
        %2123 = vmatprep.subr.bf16.mxu0 %v2067
        %2124 = vmatpush1.bf16.msra.mxu0 %v2066
        %2125 = vmatprep.subr.bf16.mxu0 %v2064
        %2126 = vmatpush1.bf16.msra.mxu0 %v2063
        %2127 = vmatprep.subr.bf16.mxu0 0
        %2128 = vmatpush2.bf16.msra.mxu0 0
        %2129 = vmatprep.subr.bf16.mxu0 0
        %2130 = vmatpush2.bf16.msra.mxu0 0
        %2131 = vmatprep.subr.bf16.mxu0 0
        %2132 = vmatpush2.bf16.msra.mxu0 0
        %2133 = vmatprep.subr.bf16.mxu0 0
        %2134 = vmatpush2.bf16.msra.mxu0 0
        %2135 = vmatprep.subr.bf16.mxu0 0
        %2136 = vmatpush2.bf16.msra.mxu0 0
        %2137 = vmatprep.subr.bf16.mxu0 0
        %2138 = vmatpush2.bf16.msra.mxu0 0
        %2139 = vmatprep.subr.bf16.mxu0 0
        %2140 = vmatpush2.bf16.msra.mxu0 0
        %2141 = vmatprep.subr.bf16.mxu0 0
        %2142 = vmatpush2.bf16.msra.mxu0 0
        %2143 = vmatprep.mubr.bf16.mxu0 0
        %2144 = vmatmul.mubr.bf16.gmra.mxu0 %v1926
        %v2145 = vpop.f32.mrf.mxu0
        %v2146 = vadd.f32 %v1971, %v2145
        %v2147 = vpop.f32.mrf.mxu0
        %v2148 = vadd.f32 %v1975, %v2147
        %v2149 = vpop.f32.mrf.mxu0
        %v2150 = vadd.f32 %v1971, %v2149
        %v2151 = vpop.f32.mrf.mxu0
        %v2152 = vadd.f32 %v1975, %v2151
        %2153 = vmatprep.mubr.bf16.mxu0 0
        %2154 = vmatmul.mubr.bf16.gmra.mxu0 %v1927
        %v2155 = vpop.f32.mrf.mxu0
        %v2156 = vadd.f32 %v1971, %v2155
        %v2157 = vpop.f32.mrf.mxu0
        %v2158 = vadd.f32 %v1975, %v2157
        %v2159 = vpop.f32.mrf.mxu0
        %v2160 = vadd.f32 %v1971, %v2159
        %v2161 = vpop.f32.mrf.mxu0
        %v2162 = vadd.f32 %v1975, %v2161
        %2163 = vmatprep.mubr.bf16.mxu0 0
        %2164 = vmatmul.mubr.bf16.gmra.mxu0 %v1928
        %v2165 = vpop.f32.mrf.mxu0
        %v2166 = vadd.f32 %v1971, %v2165
        %v2167 = vpop.f32.mrf.mxu0
        %v2168 = vadd.f32 %v1975, %v2167
        %v2169 = vpop.f32.mrf.mxu0
        %v2170 = vadd.f32 %v1971, %v2169
        %v2171 = vpop.f32.mrf.mxu0
        %v2172 = vadd.f32 %v1975, %v2171
        %2173 = vmatprep.mubr.bf16.mxu0 0
        %2174 = vmatmul.mubr.bf16.gmra.mxu0 %v1929
        %v2175 = vpop.f32.mrf.mxu0
        %v2176 = vadd.f32 %v1971, %v2175
        %v2177 = vpop.f32.mrf.mxu0
        %v2178 = vadd.f32 %v1975, %v2177
        %v2179 = vpop.f32.mrf.mxu0
        %v2180 = vadd.f32 %v1971, %v2179
        %v2181 = vpop.f32.mrf.mxu0
        %v2182 = vadd.f32 %v1975, %v2181
        %2183 = vmatprep.mubr.bf16.mxu0 0
        %2184 = vmatmul.mubr.bf16.gmra.mxu0 %v1930
        %v2185 = vpop.f32.mrf.mxu0
        %v2186 = vadd.f32 %v1971, %v2185
        %v2187 = vpop.f32.mrf.mxu0
        %v2188 = vadd.f32 %v1975, %v2187
        %v2189 = vpop.f32.mrf.mxu0
        %v2190 = vadd.f32 %v1971, %v2189
        %v2191 = vpop.f32.mrf.mxu0
        %v2192 = vadd.f32 %v1975, %v2191
        %2193 = vmatprep.mubr.bf16.mxu0 0
        %2194 = vmatmul.mubr.bf16.gmra.mxu0 %v1931
        %v2195 = vpop.f32.mrf.mxu0
        %v2196 = vadd.f32 %v1971, %v2195
        %v2197 = vpop.f32.mrf.mxu0
        %v2198 = vadd.f32 %v1975, %v2197
        %v2199 = vpop.f32.mrf.mxu0
        %v2200 = vadd.f32 %v1971, %v2199
        %v2201 = vpop.f32.mrf.mxu0
        %v2202 = vadd.f32 %v1975, %v2201
        %2203 = vmatprep.mubr.bf16.mxu0 0
        %2204 = vmatmul.mubr.bf16.gmra.mxu0 %v1932
        %v2205 = vpop.f32.mrf.mxu0
        %v2206 = vadd.f32 %v1971, %v2205
        %v2207 = vpop.f32.mrf.mxu0
        %v2208 = vadd.f32 %v1975, %v2207
        %v2209 = vpop.f32.mrf.mxu0
        %v2210 = vadd.f32 %v1971, %v2209
        %v2211 = vpop.f32.mrf.mxu0
        %v2212 = vadd.f32 %v1975, %v2211
        %2213 = vmatprep.mubr.bf16.mxu0 0
        %2214 = vmatmul.mubr.bf16.gmra.mxu0 %v1933
        %v2215 = vpop.f32.mrf.mxu0
        %v2216 = vadd.f32 %v1971, %v2215
        %v2217 = vpop.f32.mrf.mxu0
        %v2218 = vadd.f32 %v1975, %v2217
        %v2219 = vpop.f32.mrf.mxu0
        %v2220 = vadd.f32 %v1971, %v2219
        %v2221 = vpop.f32.mrf.mxu0
        %v2222 = vadd.f32 %v1975, %v2221
        %2223 = vdwg.mxu0
        %2224 = vmatprep.subr.bf16.mxu0 0
        %2225 = vmatpush1.bf16.msra.mxu0 %v2086
        %2226 = vmatprep.subr.bf16.mxu0 0
        %2227 = vmatpush1.bf16.msra.mxu0 %v2083
        %2228 = vmatprep.subr.bf16.mxu0 0
        %2229 = vmatpush1.bf16.msra.mxu0 %v2080
        %2230 = vmatprep.subr.bf16.mxu0 0
        %2231 = vmatpush1.bf16.msra.mxu0 %v2077
        %2232 = vmatprep.subr.bf16.mxu0 0
        %2233 = vmatpush1.bf16.msra.mxu0 %v2074
        %2234 = vmatprep.subr.bf16.mxu0 0
        %2235 = vmatpush1.bf16.msra.mxu0 %v2071
        %2236 = vmatprep.subr.bf16.mxu0 0
        %2237 = vmatpush1.bf16.msra.mxu0 %v2068
        %2238 = vmatprep.subr.bf16.mxu0 0
        %2239 = vmatpush1.bf16.msra.mxu0 %v2065
        %2240 = vmatprep.subr.bf16.mxu0 0
        %2241 = vmatpush2.bf16.msra.mxu0 0
        %2242 = vmatprep.subr.bf16.mxu0 0
        %2243 = vmatpush2.bf16.msra.mxu0 0
        %2244 = vmatprep.subr.bf16.mxu0 0
        %2245 = vmatpush2.bf16.msra.mxu0 0
        %2246 = vmatprep.subr.bf16.mxu0 0
        %2247 = vmatpush2.bf16.msra.mxu0 0
        %2248 = vmatprep.subr.bf16.mxu0 0
        %2249 = vmatpush2.bf16.msra.mxu0 0
        %2250 = vmatprep.subr.bf16.mxu0 0
        %2251 = vmatpush2.bf16.msra.mxu0 0
        %2252 = vmatprep.subr.bf16.mxu0 0
        %2253 = vmatpush2.bf16.msra.mxu0 0
        %2254 = vmatprep.subr.bf16.mxu0 0
        %2255 = vmatpush2.bf16.msra.mxu0 0
        %2256 = vmatprep.mubr.bf16.mxu0 0
        %2257 = vmatmul.mubr.bf16.gmra.mxu0 %v1926
        %v2258 = vpop.f32.mrf.mxu0
        %v2259 = vadd.f32 %v1979, %v2258
        %v2260 = vpop.f32.mrf.mxu0
        %v2261 = vpop.f32.mrf.mxu0
        %v2262 = vadd.f32 %v1979, %v2261
        %v2263 = vpop.f32.mrf.mxu0
        %2264 = vmatprep.mubr.bf16.mxu0 0
        %2265 = vmatmul.mubr.bf16.gmra.mxu0 %v1927
        %v2266 = vpop.f32.mrf.mxu0
        %v2267 = vadd.f32 %v1979, %v2266
        %v2268 = vpop.f32.mrf.mxu0
        %v2269 = vpop.f32.mrf.mxu0
        %v2270 = vadd.f32 %v1979, %v2269
        %v2271 = vpop.f32.mrf.mxu0
        %2272 = vmatprep.mubr.bf16.mxu0 0
        %2273 = vmatmul.mubr.bf16.gmra.mxu0 %v1928
        %v2274 = vpop.f32.mrf.mxu0
        %v2275 = vadd.f32 %v1979, %v2274
        %v2276 = vpop.f32.mrf.mxu0
        %v2277 = vpop.f32.mrf.mxu0
        %v2278 = vadd.f32 %v1979, %v2277
        %v2279 = vpop.f32.mrf.mxu0
        %2280 = vmatprep.mubr.bf16.mxu0 0
        %2281 = vmatmul.mubr.bf16.gmra.mxu0 %v1929
        %v2282 = vpop.f32.mrf.mxu0
        %v2283 = vadd.f32 %v1979, %v2282
        %v2284 = vpop.f32.mrf.mxu0
        %v2285 = vpop.f32.mrf.mxu0
        %v2286 = vadd.f32 %v1979, %v2285
        %v2287 = vpop.f32.mrf.mxu0
        %2288 = vmatprep.mubr.bf16.mxu0 0
        %2289 = vmatmul.mubr.bf16.gmra.mxu0 %v1930
        %v2290 = vpop.f32.mrf.mxu0
        %v2291 = vadd.f32 %v1979, %v2290
        %v2292 = vpop.f32.mrf.mxu0
        %v2293 = vpop.f32.mrf.mxu0
        %v2294 = vadd.f32 %v1979, %v2293
        %v2295 = vpop.f32.mrf.mxu0
        %2296 = vmatprep.mubr.bf16.mxu0 0
        %2297 = vmatmul.mubr.bf16.gmra.mxu0 %v1931
        %v2298 = vpop.f32.mrf.mxu0
        %v2299 = vadd.f32 %v1979, %v2298
        %v2300 = vpop.f32.mrf.mxu0
        %v2301 = vpop.f32.mrf.mxu0
        %v2302 = vadd.f32 %v1979, %v2301
        %v2303 = vpop.f32.mrf.mxu0
        %2304 = vmatprep.mubr.bf16.mxu0 0
        %2305 = vmatmul.mubr.bf16.gmra.mxu0 %v1932
        %v2306 = vpop.f32.mrf.mxu0
        %v2307 = vadd.f32 %v1979, %v2306
        %v2308 = vpop.f32.mrf.mxu0
        %v2309 = vpop.f32.mrf.mxu0
        %v2310 = vadd.f32 %v1979, %v2309
        %v2311 = vpop.f32.mrf.mxu0
        %2312 = vmatprep.mubr.bf16.mxu0 0
        %2313 = vmatmul.mubr.bf16.gmra.mxu0 %v1933
        %v2314 = vpop.f32.mrf.mxu0
        %v2315 = vadd.f32 %v1979, %v2314
        %v2316 = vpop.f32.mrf.mxu0
        %v2317 = vpop.f32.mrf.mxu0
        %v2318 = vadd.f32 %v1979, %v2317
        %v2319 = vpop.f32.mrf.mxu0
        %2320 = vdwg.mxu0
        %v2321 = vunpack.c.l.bf16 %v529
        %v2322 = vunpack.c.l.bf16 %v530
        %v2323 = vunpack.c.l.bf16 %v531
        %v2324 = vunpack.c.l.bf16 %v532
        %v2325 = vunpack.c.l.bf16 %v533
        %v2326 = vunpack.c.l.bf16 %v534
        %v2327 = vunpack.c.l.bf16 %v535
        %v2328 = vunpack.c.l.bf16 %v536
        %v2329 = vunpack.c.l.bf16 %v537
        %v2330 = vunpack.c.l.bf16 %v538
        %v2331 = vunpack.c.l.bf16 %v539
        %v2332 = vunpack.c.l.bf16 %v540
        %v2333 = vunpack.c.l.bf16 %v541
        %v2334 = vunpack.c.l.bf16 %v542
        %v2335 = vunpack.c.l.bf16 %v543
        %v2336 = vunpack.c.l.bf16 %v544
        %v2337 = vmul.f32 %v2148, %v1359
        %v2338 = vmul.f32 %v2152, %v1361
        %v2339 = vmul.f32 %v2158, %v1363
        %v2340 = vmul.f32 %v2162, %v1365
        %v2341 = vmul.f32 %v2168, %v1367
        %v2342 = vmul.f32 %v2172, %v1369
        %v2343 = vmul.f32 %v2178, %v1371
        %v2344 = vmul.f32 %v2182, %v1373
        %v2345 = vmul.f32 %v2188, %v1375
        %v2346 = vmul.f32 %v2192, %v1377
        %v2347 = vmul.f32 %v2198, %v1379
        %v2348 = vmul.f32 %v2202, %v1381
        %v2349 = vmul.f32 %v2208, %v1383
        %v2350 = vmul.f32 %v2212, %v1385
        %v2351 = vmul.f32 %v2218, %v1387
        %v2352 = vmul.f32 %v2222, %v1389
        %v2353 = vadd.f32 %v2321, %v2337
        %v2354 = vadd.f32 %v2322, %v2338
        %v2355 = vadd.f32 %v2323, %v2339
        %v2356 = vadd.f32 %v2324, %v2340
        %v2357 = vadd.f32 %v2325, %v2341
        %v2358 = vadd.f32 %v2326, %v2342
        %v2359 = vadd.f32 %v2327, %v2343
        %v2360 = vadd.f32 %v2328, %v2344
        %v2361 = vadd.f32 %v2329, %v2345
        %v2362 = vadd.f32 %v2330, %v2346
        %v2363 = vadd.f32 %v2331, %v2347
        %v2364 = vadd.f32 %v2332, %v2348
        %v2365 = vadd.f32 %v2333, %v2349
        %v2366 = vadd.f32 %v2334, %v2350
        %v2367 = vadd.f32 %v2335, %v2351
        %v2368 = vadd.f32 %v2336, %v2352
        %v2369 = vadd.f32 %v2353, %v2259
        %v2370 = vadd.f32 %v2354, %v2262
        %v2371 = vadd.f32 %v2355, %v2267
        %v2372 = vadd.f32 %v2356, %v2270
        %v2373 = vadd.f32 %v2357, %v2275
        %v2374 = vadd.f32 %v2358, %v2278
        %v2375 = vadd.f32 %v2359, %v2283
        %v2376 = vadd.f32 %v2360, %v2286
        %v2377 = vadd.f32 %v2361, %v2291
        %v2378 = vadd.f32 %v2362, %v2294
        %v2379 = vadd.f32 %v2363, %v2299
        %v2380 = vadd.f32 %v2364, %v2302
        %v2381 = vadd.f32 %v2365, %v2307
        %v2382 = vadd.f32 %v2366, %v2310
        %v2383 = vadd.f32 %v2367, %v2315
        %v2384 = vadd.f32 %v2368, %v2318
        %v2385 = vpack.c.bf16 %v2370, %v2369
        %v2386 = vpack.c.bf16 %v2372, %v2371
        %v2387 = vpack.c.bf16 %v2374, %v2373
        %v2388 = vpack.c.bf16 %v2376, %v2375
        %v2389 = vpack.c.bf16 %v2378, %v2377
        %v2390 = vpack.c.bf16 %v2380, %v2379
        %v2391 = vpack.c.bf16 %v2382, %v2381
        %v2392 = vpack.c.bf16 %v2384, %v2383
        %v2401 = vunpack.c.l.b16 %v2385
        %v2402 = vunpack.c.h.b16 %v2385
        %v2403 = vunpack.c.l.b16 %v2386
        %v2404 = vunpack.c.h.b16 %v2386
        %v2405 = vunpack.c.l.b16 %v2387
        %v2406 = vunpack.c.h.b16 %v2387
        %v2407 = vunpack.c.l.b16 %v2388
        %v2408 = vunpack.c.h.b16 %v2388
        %v2409 = vunpack.c.l.b16 %v2389
        %v2410 = vunpack.c.h.b16 %v2389
        %v2411 = vunpack.c.l.b16 %v2390
        %v2412 = vunpack.c.h.b16 %v2390
        %v2413 = vunpack.c.l.b16 %v2391
        %v2414 = vunpack.c.h.b16 %v2391
        %v2415 = vunpack.c.l.b16 %v2392
        %v2416 = vunpack.c.h.b16 %v2392
        %v2417 = vpack.c.b16 %v2401, %v2401
        %v2418 = vpack.c.b16 %v2402, %v2402
        %v2419 = vpack.c.b16 %v2403, %v2403
        %v2420 = vpack.c.b16 %v2404, %v2404
        %v2421 = vpack.c.b16 %v2405, %v2405
        %v2422 = vpack.c.b16 %v2406, %v2406
        %v2423 = vpack.c.b16 %v2407, %v2407
        %v2424 = vpack.c.b16 %v2408, %v2408
        %v2425 = vpack.c.b16 %v2409, %v2409
        %v2426 = vpack.c.b16 %v2410, %v2410
        %v2427 = vpack.c.b16 %v2411, %v2411
        %v2428 = vpack.c.b16 %v2412, %v2412
        %v2429 = vpack.c.b16 %v2413, %v2413
        %v2430 = vpack.c.b16 %v2414, %v2414
        %v2431 = vpack.c.b16 %v2415, %v2415
        %v2432 = vpack.c.b16 %v2416, %v2416
        %2449 = vst [vmem:[%s500] sm:$0xf] %v2417
        %2450 = vst [vmem:[%s500 + $0x4] sm:$0xf] %v2418
        %2451 = vst [vmem:[%s500 + $0x8] sm:$0xf] %v2419
        %2452 = vst [vmem:[%s500 + $0xc] sm:$0xf] %v2420
        %2453 = vst [vmem:[%s500 + $0x10] sm:$0xf] %v2421
        %2454 = vst [vmem:[%s500 + $0x14] sm:$0xf] %v2422
        %2455 = vst [vmem:[%s500 + $0x18] sm:$0xf] %v2423
        %2456 = vst [vmem:[%s500 + $0x1c] sm:$0xf] %v2424
        %2457 = vst [vmem:[%s500 + $0x20] sm:$0xf] %v2425
        %2458 = vst [vmem:[%s500 + $0x24] sm:$0xf] %v2426
        %2459 = vst [vmem:[%s500 + $0x28] sm:$0xf] %v2427
        %2460 = vst [vmem:[%s500 + $0x2c] sm:$0xf] %v2428
        %2461 = vst [vmem:[%s500 + $0x30] sm:$0xf] %v2429
        %2462 = vst [vmem:[%s500 + $0x34] sm:$0xf] %v2430
        %2463 = vst [vmem:[%s500 + $0x38] sm:$0xf] %v2431
        %2464 = vst [vmem:[%s500 + $0x3c] sm:$0xf] %v2432
        %v2465 = vunpack.c.l.bf16 %v545
        %v2466 = vunpack.c.l.bf16 %v546
        %v2467 = vunpack.c.l.bf16 %v547
        %v2468 = vunpack.c.l.bf16 %v548
        %v2469 = vunpack.c.l.bf16 %v549
        %v2470 = vunpack.c.l.bf16 %v550
        %v2471 = vunpack.c.l.bf16 %v551
        %v2472 = vunpack.c.l.bf16 %v552
        %v2473 = vunpack.c.l.bf16 %v553
        %v2474 = vunpack.c.l.bf16 %v554
        %v2475 = vunpack.c.l.bf16 %v555
        %v2476 = vunpack.c.l.bf16 %v556
        %v2477 = vunpack.c.l.bf16 %v557
        %v2478 = vunpack.c.l.bf16 %v558
        %v2479 = vunpack.c.l.bf16 %v559
        %v2480 = vunpack.c.l.bf16 %v560
        %v2481 = vunpack.c.l.bf16 %v561
        %v2482 = vunpack.c.l.bf16 %v562
        %v2483 = vunpack.c.l.bf16 %v563
        %v2484 = vunpack.c.l.bf16 %v564
        %v2485 = vunpack.c.l.bf16 %v565
        %v2486 = vunpack.c.l.bf16 %v566
        %v2487 = vunpack.c.l.bf16 %v567
        %v2488 = vunpack.c.l.bf16 %v568
        %v2489 = vunpack.c.l.bf16 %v569
        %v2490 = vunpack.c.l.bf16 %v570
        %v2491 = vunpack.c.l.bf16 %v571
        %v2492 = vunpack.c.l.bf16 %v572
        %v2493 = vunpack.c.l.bf16 %v573
        %v2494 = vunpack.c.l.bf16 %v574
        %v2495 = vunpack.c.l.bf16 %v575
        %v2496 = vunpack.c.l.bf16 %v576
        %v2497 = vunpack.c.l.bf16 %v577
        %v2498 = vunpack.c.l.bf16 %v578
        %v2499 = vunpack.c.l.bf16 %v579
        %v2500 = vunpack.c.l.bf16 %v580
        %v2501 = vunpack.c.l.bf16 %v581
        %v2502 = vunpack.c.l.bf16 %v582
        %v2503 = vunpack.c.l.bf16 %v583
        %v2504 = vunpack.c.l.bf16 %v584
        %v2505 = vunpack.c.l.bf16 %v585
        %v2506 = vunpack.c.l.bf16 %v586
        %v2507 = vunpack.c.l.bf16 %v587
        %v2508 = vunpack.c.l.bf16 %v588
        %v2509 = vunpack.c.l.bf16 %v589
        %v2510 = vunpack.c.l.bf16 %v590
        %v2511 = vunpack.c.l.bf16 %v591
        %v2512 = vunpack.c.l.bf16 %v592
        %v2513 = vmul.f32 %v2146, %v880
        %v2514 = vmul.f32 %v2150, %v884
        %v2515 = vmul.f32 %v2156, %v890
        %v2516 = vmul.f32 %v2160, %v894
        %v2517 = vmul.f32 %v2166, %v900
        %v2518 = vmul.f32 %v2170, %v904
        %v2519 = vmul.f32 %v2176, %v910
        %v2520 = vmul.f32 %v2180, %v914
        %v2521 = vmul.f32 %v2186, %v920
        %v2522 = vmul.f32 %v2190, %v924
        %v2523 = vmul.f32 %v2196, %v930
        %v2524 = vmul.f32 %v2200, %v934
        %v2525 = vmul.f32 %v2206, %v940
        %v2526 = vmul.f32 %v2210, %v944
        %v2527 = vmul.f32 %v2216, %v950
        %v2528 = vmul.f32 %v2220, %v954
        %v2529 = vmul.f32 %v2146, %v960
        %v2530 = vmul.f32 %v2150, %v964
        %v2531 = vmul.f32 %v2156, %v970
        %v2532 = vmul.f32 %v2160, %v974
        %v2533 = vmul.f32 %v2166, %v980
        %v2534 = vmul.f32 %v2170, %v984
        %v2535 = vmul.f32 %v2176, %v990
        %v2536 = vmul.f32 %v2180, %v994
        %v2537 = vmul.f32 %v2186, %v1000
        %v2538 = vmul.f32 %v2190, %v1004
        %v2539 = vmul.f32 %v2196, %v1010
        %v2540 = vmul.f32 %v2200, %v1014
        %v2541 = vmul.f32 %v2206, %v1020
        %v2542 = vmul.f32 %v2210, %v1024
        %v2543 = vmul.f32 %v2216, %v1030
        %v2544 = vmul.f32 %v2220, %v1034
        %v2545 = vmul.f32 %v2146, %v1040
        %v2546 = vmul.f32 %v2150, %v1044
        %v2547 = vmul.f32 %v2156, %v1050
        %v2548 = vmul.f32 %v2160, %v1054
        %v2549 = vmul.f32 %v2166, %v1060
        %v2550 = vmul.f32 %v2170, %v1064
        %v2551 = vmul.f32 %v2176, %v1070
        %v2552 = vmul.f32 %v2180, %v1074
        %v2553 = vmul.f32 %v2186, %v1080
        %v2554 = vmul.f32 %v2190, %v1084
        %v2555 = vmul.f32 %v2196, %v1090
        %v2556 = vmul.f32 %v2200, %v1094
        %v2557 = vmul.f32 %v2206, %v1100
        %v2558 = vmul.f32 %v2210, %v1104
        %v2559 = vmul.f32 %v2216, %v1110
        %v2560 = vmul.f32 %v2220, %v1114
        %v2561 = vadd.f32 %v2465, %v2513
        %v2562 = vadd.f32 %v2466, %v2514
        %v2563 = vadd.f32 %v2467, %v2515
        %v2564 = vadd.f32 %v2468, %v2516
        %v2565 = vadd.f32 %v2469, %v2517
        %v2566 = vadd.f32 %v2470, %v2518
        %v2567 = vadd.f32 %v2471, %v2519
        %v2568 = vadd.f32 %v2472, %v2520
        %v2569 = vadd.f32 %v2473, %v2521
        %v2570 = vadd.f32 %v2474, %v2522
        %v2571 = vadd.f32 %v2475, %v2523
        %v2572 = vadd.f32 %v2476, %v2524
        %v2573 = vadd.f32 %v2477, %v2525
        %v2574 = vadd.f32 %v2478, %v2526
        %v2575 = vadd.f32 %v2479, %v2527
        %v2576 = vadd.f32 %v2480, %v2528
        %v2577 = vadd.f32 %v2481, %v2529
        %v2578 = vadd.f32 %v2482, %v2530
        %v2579 = vadd.f32 %v2483, %v2531
        %v2580 = vadd.f32 %v2484, %v2532
        %v2581 = vadd.f32 %v2485, %v2533
        %v2582 = vadd.f32 %v2486, %v2534
        %v2583 = vadd.f32 %v2487, %v2535
        %v2584 = vadd.f32 %v2488, %v2536
        %v2585 = vadd.f32 %v2489, %v2537
        %v2586 = vadd.f32 %v2490, %v2538
        %v2587 = vadd.f32 %v2491, %v2539
        %v2588 = vadd.f32 %v2492, %v2540
        %v2589 = vadd.f32 %v2493, %v2541
        %v2590 = vadd.f32 %v2494, %v2542
        %v2591 = vadd.f32 %v2495, %v2543
        %v2592 = vadd.f32 %v2496, %v2544
        %v2593 = vadd.f32 %v2497, %v2545
        %v2594 = vadd.f32 %v2498, %v2546
        %v2595 = vadd.f32 %v2499, %v2547
        %v2596 = vadd.f32 %v2500, %v2548
        %v2597 = vadd.f32 %v2501, %v2549
        %v2598 = vadd.f32 %v2502, %v2550
        %v2599 = vadd.f32 %v2503, %v2551
        %v2600 = vadd.f32 %v2504, %v2552
        %v2601 = vadd.f32 %v2505, %v2553
        %v2602 = vadd.f32 %v2506, %v2554
        %v2603 = vadd.f32 %v2507, %v2555
        %v2604 = vadd.f32 %v2508, %v2556
        %v2605 = vadd.f32 %v2509, %v2557
        %v2606 = vadd.f32 %v2510, %v2558
        %v2607 = vadd.f32 %v2511, %v2559
        %v2608 = vadd.f32 %v2512, %v2560
        %v2609 = vpack.c.bf16 %v2562, %v2561
        %v2610 = vpack.c.bf16 %v2564, %v2563
        %v2611 = vpack.c.bf16 %v2566, %v2565
        %v2612 = vpack.c.bf16 %v2568, %v2567
        %v2613 = vpack.c.bf16 %v2570, %v2569
        %v2614 = vpack.c.bf16 %v2572, %v2571
        %v2615 = vpack.c.bf16 %v2574, %v2573
        %v2616 = vpack.c.bf16 %v2576, %v2575
        %v2617 = vpack.c.bf16 %v2578, %v2577
        %v2618 = vpack.c.bf16 %v2580, %v2579
        %v2619 = vpack.c.bf16 %v2582, %v2581
        %v2620 = vpack.c.bf16 %v2584, %v2583
        %v2621 = vpack.c.bf16 %v2586, %v2585
        %v2622 = vpack.c.bf16 %v2588, %v2587
        %v2623 = vpack.c.bf16 %v2590, %v2589
        %v2624 = vpack.c.bf16 %v2592, %v2591
        %v2625 = vpack.c.bf16 %v2594, %v2593
        %v2626 = vpack.c.bf16 %v2596, %v2595
        %v2627 = vpack.c.bf16 %v2598, %v2597
        %v2628 = vpack.c.bf16 %v2600, %v2599
        %v2629 = vpack.c.bf16 %v2602, %v2601
        %v2630 = vpack.c.bf16 %v2604, %v2603
        %v2631 = vpack.c.bf16 %v2606, %v2605
        %v2632 = vpack.c.bf16 %v2608, %v2607
        %v2657 = vunpack.c.l.b16 %v2609
        %v2658 = vunpack.c.h.b16 %v2609
        %v2659 = vunpack.c.l.b16 %v2610
        %v2660 = vunpack.c.h.b16 %v2610
        %v2661 = vunpack.c.l.b16 %v2611
        %v2662 = vunpack.c.h.b16 %v2611
        %v2663 = vunpack.c.l.b16 %v2612
        %v2664 = vunpack.c.h.b16 %v2612
        %v2665 = vunpack.c.l.b16 %v2613
        %v2666 = vunpack.c.h.b16 %v2613
        %v2667 = vunpack.c.l.b16 %v2614
        %v2668 = vunpack.c.h.b16 %v2614
        %v2669 = vunpack.c.l.b16 %v2615
        %v2670 = vunpack.c.h.b16 %v2615
        %v2671 = vunpack.c.l.b16 %v2616
        %v2672 = vunpack.c.h.b16 %v2616
        %v2673 = vunpack.c.l.b16 %v2617
        %v2674 = vunpack.c.h.b16 %v2617
        %v2675 = vunpack.c.l.b16 %v2618
        %v2676 = vunpack.c.h.b16 %v2618
        %v2677 = vunpack.c.l.b16 %v2619
        %v2678 = vunpack.c.h.b16 %v2619
        %v2679 = vunpack.c.l.b16 %v2620
        %v2680 = vunpack.c.h.b16 %v2620
        %v2681 = vunpack.c.l.b16 %v2621
        %v2682 = vunpack.c.h.b16 %v2621
        %v2683 = vunpack.c.l.b16 %v2622
        %v2684 = vunpack.c.h.b16 %v2622
        %v2685 = vunpack.c.l.b16 %v2623
        %v2686 = vunpack.c.h.b16 %v2623
        %v2687 = vunpack.c.l.b16 %v2624
        %v2688 = vunpack.c.h.b16 %v2624
        %v2689 = vunpack.c.l.b16 %v2625
        %v2690 = vunpack.c.h.b16 %v2625
        %v2691 = vunpack.c.l.b16 %v2626
        %v2692 = vunpack.c.h.b16 %v2626
        %v2693 = vunpack.c.l.b16 %v2627
        %v2694 = vunpack.c.h.b16 %v2627
        %v2695 = vunpack.c.l.b16 %v2628
        %v2696 = vunpack.c.h.b16 %v2628
        %v2697 = vunpack.c.l.b16 %v2629
        %v2698 = vunpack.c.h.b16 %v2629
        %v2699 = vunpack.c.l.b16 %v2630
        %v2700 = vunpack.c.h.b16 %v2630
        %v2701 = vunpack.c.l.b16 %v2631
        %v2702 = vunpack.c.h.b16 %v2631
        %v2703 = vunpack.c.l.b16 %v2632
        %v2704 = vunpack.c.h.b16 %v2632
        %v2705 = vpack.c.b16 %v2657, %v2657
        %v2706 = vpack.c.b16 %v2658, %v2658
        %v2707 = vpack.c.b16 %v2659, %v2659
        %v2708 = vpack.c.b16 %v2660, %v2660
        %v2709 = vpack.c.b16 %v2661, %v2661
        %v2710 = vpack.c.b16 %v2662, %v2662
        %v2711 = vpack.c.b16 %v2663, %v2663
        %v2712 = vpack.c.b16 %v2664, %v2664
        %v2713 = vpack.c.b16 %v2665, %v2665
        %v2714 = vpack.c.b16 %v2666, %v2666
        %v2715 = vpack.c.b16 %v2667, %v2667
        %v2716 = vpack.c.b16 %v2668, %v2668
        %v2717 = vpack.c.b16 %v2669, %v2669
        %v2718 = vpack.c.b16 %v2670, %v2670
        %v2719 = vpack.c.b16 %v2671, %v2671
        %v2720 = vpack.c.b16 %v2672, %v2672
        %v2721 = vpack.c.b16 %v2673, %v2673
        %v2722 = vpack.c.b16 %v2674, %v2674
        %v2723 = vpack.c.b16 %v2675, %v2675
        %v2724 = vpack.c.b16 %v2676, %v2676
        %v2725 = vpack.c.b16 %v2677, %v2677
        %v2726 = vpack.c.b16 %v2678, %v2678
        %v2727 = vpack.c.b16 %v2679, %v2679
        %v2728 = vpack.c.b16 %v2680, %v2680
        %v2729 = vpack.c.b16 %v2681, %v2681
        %v2730 = vpack.c.b16 %v2682, %v2682
        %v2731 = vpack.c.b16 %v2683, %v2683
        %v2732 = vpack.c.b16 %v2684, %v2684
        %v2733 = vpack.c.b16 %v2685, %v2685
        %v2734 = vpack.c.b16 %v2686, %v2686
        %v2735 = vpack.c.b16 %v2687, %v2687
        %v2736 = vpack.c.b16 %v2688, %v2688
        %v2737 = vpack.c.b16 %v2689, %v2689
        %v2738 = vpack.c.b16 %v2690, %v2690
        %v2739 = vpack.c.b16 %v2691, %v2691
        %v2740 = vpack.c.b16 %v2692, %v2692
        %v2741 = vpack.c.b16 %v2693, %v2693
        %v2742 = vpack.c.b16 %v2694, %v2694
        %v2743 = vpack.c.b16 %v2695, %v2695
        %v2744 = vpack.c.b16 %v2696, %v2696
        %v2745 = vpack.c.b16 %v2697, %v2697
        %v2746 = vpack.c.b16 %v2698, %v2698
        %v2747 = vpack.c.b16 %v2699, %v2699
        %v2748 = vpack.c.b16 %v2700, %v2700
        %v2749 = vpack.c.b16 %v2701, %v2701
        %v2750 = vpack.c.b16 %v2702, %v2702
        %v2751 = vpack.c.b16 %v2703, %v2703
        %v2752 = vpack.c.b16 %v2704, %v2704
        %2801 = vst [vmem:[%s507] sm:$0xf] %v2705
        %2802 = vst [vmem:[%s507 + $0x4] sm:$0xf] %v2706
        %2803 = vst [vmem:[%s507 + $0x8] sm:$0xf] %v2707
        %2804 = vst [vmem:[%s507 + $0xc] sm:$0xf] %v2708
        %2805 = vst [vmem:[%s507 + $0x10] sm:$0xf] %v2709
        %2806 = vst [vmem:[%s507 + $0x14] sm:$0xf] %v2710
        %2807 = vst [vmem:[%s507 + $0x18] sm:$0xf] %v2711
        %2808 = vst [vmem:[%s507 + $0x1c] sm:$0xf] %v2712
        %2809 = vst [vmem:[%s507 + $0x20] sm:$0xf] %v2713
        %2810 = vst [vmem:[%s507 + $0x24] sm:$0xf] %v2714
        %2811 = vst [vmem:[%s507 + $0x28] sm:$0xf] %v2715
        %2812 = vst [vmem:[%s507 + $0x2c] sm:$0xf] %v2716
        %2813 = vst [vmem:[%s507 + $0x30] sm:$0xf] %v2717
        %2814 = vst [vmem:[%s507 + $0x34] sm:$0xf] %v2718
        %2815 = vst [vmem:[%s507 + $0x38] sm:$0xf] %v2719
        %2816 = vst [vmem:[%s507 + $0x3c] sm:$0xf] %v2720
        %2817 = vst [vmem:[%s507 + $0x40] sm:$0xf] %v2721
        %2818 = vst [vmem:[%s507 + $0x44] sm:$0xf] %v2722
        %2819 = vst [vmem:[%s507 + $0x48] sm:$0xf] %v2723
        %2820 = vst [vmem:[%s507 + $0x4c] sm:$0xf] %v2724
        %2821 = vst [vmem:[%s507 + $0x50] sm:$0xf] %v2725
        %2822 = vst [vmem:[%s507 + $0x54] sm:$0xf] %v2726
        %2823 = vst [vmem:[%s507 + $0x58] sm:$0xf] %v2727
        %2824 = vst [vmem:[%s507 + $0x5c] sm:$0xf] %v2728
        %2825 = vst [vmem:[%s507 + $0x60] sm:$0xf] %v2729
        %2826 = vst [vmem:[%s507 + $0x64] sm:$0xf] %v2730
        %2827 = vst [vmem:[%s507 + $0x68] sm:$0xf] %v2731
        %2828 = vst [vmem:[%s507 + $0x6c] sm:$0xf] %v2732
        %2829 = vst [vmem:[%s507 + $0x70] sm:$0xf] %v2733
        %2830 = vst [vmem:[%s507 + $0x74] sm:$0xf] %v2734
        %2831 = vst [vmem:[%s507 + $0x78] sm:$0xf] %v2735
        %2832 = vst [vmem:[%s507 + $0x7c] sm:$0xf] %v2736
        %2833 = vst [vmem:[%s507 + $0x80] sm:$0xf] %v2737
        %2834 = vst [vmem:[%s507 + $0x84] sm:$0xf] %v2738
        %2835 = vst [vmem:[%s507 + $0x88] sm:$0xf] %v2739
        %2836 = vst [vmem:[%s507 + $0x8c] sm:$0xf] %v2740
        %2837 = vst [vmem:[%s507 + $0x90] sm:$0xf] %v2741
        %2838 = vst [vmem:[%s507 + $0x94] sm:$0xf] %v2742
        %2839 = vst [vmem:[%s507 + $0x98] sm:$0xf] %v2743
        %2840 = vst [vmem:[%s507 + $0x9c] sm:$0xf] %v2744
        %2841 = vst [vmem:[%s507 + $0xa0] sm:$0xf] %v2745
        %2842 = vst [vmem:[%s507 + $0xa4] sm:$0xf] %v2746
        %2843 = vst [vmem:[%s507 + $0xa8] sm:$0xf] %v2747
        %2844 = vst [vmem:[%s507 + $0xac] sm:$0xf] %v2748
        %2845 = vst [vmem:[%s507 + $0xb0] sm:$0xf] %v2749
        %2846 = vst [vmem:[%s507 + $0xb4] sm:$0xf] %v2750
        %2847 = vst [vmem:[%s507 + $0xb8] sm:$0xf] %v2751
        %2848 = vst [vmem:[%s507 + $0xbc] sm:$0xf] %v2752
        %s2849 = sand.u32 %s221, 1
        %s2850 = scalar_lea.sflag [#allocation5], %s2849
        %s2851 = sand.u32 %s221, 1
        %s2852 = smul.addr %s2851, 64
        %s2853 = scalar_lea.vmem [#allocation15], %s2852
        %s2854 = sand.u32 %s247, 1
        %s2855 = scalar_lea.sflag [#allocation17], %s2854
        %s2856 = sand.u32 %s247, 1
        %s2857 = smul.addr %s2856, 192
        %s2858 = scalar_lea.vmem [#allocation16], %s2857
        // Predicated region
        $region81: #{painn_update.1} parent=51 // pred_check
          %p2859 = pneg %p231
        $region82: #{painn_update.1} parent=51 // pred_check_branch
          %2861 = sbr.rel (%p2859) target = $region84
        $region83: #{painn_update.1} parent=51 // pred_region
          %s2862 = smul.u32 16, %s35
          %s2863 = ssub.s32 38, %s2862
          %p2864 = scmp.lt.s32.totalorder %s2863, 16
          %s2865 = scalar_select %p2864, %s2863, 16
          %s2866 = smul.u32 64, %s2865
          %s2868 = ssub.s32 1024, %s2866
          %2869 = vsyncadd %s2850, %s2868
          %p2870 = scmp.ne.s32.totalorder 0, %s2866
          %s2871 = smul.addr %s2862, 64
          %s2872 = scalar_lea.hbm %s8, %s2871
          %s2873 = smul.u32 4, %s2865
          %s2874 = sshll.u32 %s2853, 4
          %s2875 = int_to_ptr.vmem [resolvable:$true] %s2874
          %s2876 = sshll.u32 %s2873, 4
          %2880 = dma.vmem_to_hbm [thread:$0]  (%p2870), %s2875, %s2876, %s2872, %s2850, 64, 64, 4
        $region84: #{painn_update.1} parent=51 // pred_fallthru
          _
        // Predicated region
        $region85: #{painn_update.1} parent=51 // pred_check
          %p2881 = pneg %p257
        $region86: #{painn_update.1} parent=51 // pred_check_branch
          %2883 = sbr.rel (%p2881) target = $region88
        $region87: #{painn_update.1} parent=51 // pred_region
          #allocation21 [shape = 'u32[6]{0}', space=smem, size = 0x18, scoped, tag = 'DMA stride descriptor']
          %s2884 = smul.u32 16, %s35
          %s2885 = ssub.s32 38, %s2884
          %p2886 = scmp.lt.s32.totalorder %s2885, 16
          %s2887 = scalar_select %p2886, %s2885, 16
          %s2888 = smul.u32 192, %s2887
          %s2890 = ssub.s32 3072, %s2888
          %2891 = vsyncadd %s2855, %s2890
          %p2892 = scmp.ne.s32.totalorder 0, %s2888
          %s2893 = smul.addr %s2884, 64
          %s2894 = scalar_lea.hbm %s9, %s2893
          %s2895 = smul.u32 4, %s2887
          %s2896 = smul.u32 %s2895, 3
          %s2898 = sshll.u32 1, 14
          %s2899 = sxor.u32 4294967295, %s2898
          %s2902 = sshll.u32 7, 18
          %s2903 = sxor.u32 4294967295, %s2902
          %s2904 = sand.u32 0, %s2903
          %s2906 = sor.u32 %s2904, 0
          %s2907 = sshll.u32 %s2858, 4
          %s2908 = int_to_ptr.vmem [resolvable:$true] %s2907
          %s2909 = sshll.u32 %s2896, 4
          %2914 = sst [smem:[#allocation21]] 1024
          %s2915 = scalar_lea.smem [#allocation21], 1
          %2916 = sst [smem:[%s2915]] 2432
          %s2917 = scalar_lea.smem [#allocation21], 2
          %2918 = sst [smem:[%s2917]] %s2887
          %s2919 = scalar_lea.smem [#allocation21], 3
          %2920 = sst [smem:[%s2919]] 64
          %s2921 = scalar_lea.smem [#allocation21], 4
          %2922 = sst [smem:[%s2921]] 64
          %s2923 = scalar_lea.smem [#allocation21], 5
          %2924 = sst [smem:[%s2923]] 4
          %2926 = dma.general (%p2892), %s2908, %s2909, %s2894, %s2855, 131072, [#allocation21], %s2906, 0
        $region88: #{painn_update.1} parent=51 // pred_fallthru
          _
      $region52: #{painn_update.1} parent=5 // pred_fallthru
        _
      %p2927 = scmp.le.s32.totalorder 2, %s30
      // Predicated region
      $region89: #{painn_update.1} parent=5 // pred_check
        %p2928 = pneg %p2927
      $region90: #{painn_update.1} parent=5 // pred_check_branch
        %2930 = sbr.rel (%p2928) target = $region92
      $region91: #{painn_update.1} parent=5 // pred_region
        %s2931 = ssub.s32 %s30, 2
        // Predicated region
        $region93: #{painn_update.1} parent=91 // pred_check
          %p2932 = pneg %p237
        $region94: #{painn_update.1} parent=91 // pred_check_branch
          %2934 = sbr.rel (%p2932) target = $region96
        $region95: #{painn_update.1} parent=91 // pred_region
          %s2935 = sand.u32 %s222, 1
          %s2936 = scalar_lea.sflag [#allocation5], %s2935
          %s2937 = sand.u32 %s222, 1
          %s2938 = smul.addr %s2937, 64
          %s2939 = scalar_lea.vmem [#allocation15], %s2938
          %2940 = dma.done %s2936, 1024
        $region96: #{painn_update.1} parent=91 // pred_fallthru
          _
        // Predicated region
        $region97: #{painn_update.1} parent=91 // pred_check
          %p2941 = pneg %p263
        $region98: #{painn_update.1} parent=91 // pred_check_branch
          %2943 = sbr.rel (%p2941) target = $region100
        $region99: #{painn_update.1} parent=91 // pred_region
          %s2944 = sand.u32 %s248, 1
          %s2945 = scalar_lea.sflag [#allocation17], %s2944
          %s2946 = sand.u32 %s248, 1
          %s2947 = smul.addr %s2946, 192
          %s2948 = scalar_lea.vmem [#allocation16], %s2947
          %2949 = dma.done %s2945, 3072
        $region100: #{painn_update.1} parent=91 // pred_fallthru
          _
      $region92: #{painn_update.1} parent=5 // pred_fallthru
        _
    $region6: #{painn_update.1} parent=1 // loop_footer
      %s34 = sadd.s32 1, %s30
    $region7: #{painn_update.1} parent=1 // loop_footer_branch
      %29 = sbr.rel target = $region3
    $region8: #{painn_update.1} parent=1 // loop_exit
      _
    %2950 = vsyncpa [#allocation4], 1
    %s2951 = scalar_lea.sflag [#allocation4], 1
    %2952 = vsyncpa %s2951, 1
    %2953 = vsyncpa [#allocation7], 1
    %s2954 = scalar_lea.sflag [#allocation7], 1
    %2955 = vsyncpa %s2954, 1
    %2956 = vsyncpa [#allocation10], 1
    %2957 = vsyncpa [#allocation13], 1
    %2958 = vsyncpa [#allocation5], 1
    %s2959 = scalar_lea.sflag [#allocation5], 1
    %2960 = vsyncpa %s2959, 1
    %2961 = vsyncpa [#allocation17], 1
    %s2962 = scalar_lea.sflag [#allocation17], 1
    %2963 = vsyncpa %s2962, 1

</llo_original>
